<compile_context>
chip_gen: v7x
topology: tpu7x:2x2x1
jax: 0.10.0
libtpu: 0.0.40
codegen_flags: <defaults>
</compile_context>

<pallas_src>
import functools

import jax
import jax.numpy as jnp
from jax.experimental import pallas as pl
from jax.experimental.pallas import tpu as pltpu


_VMEM_LIMIT = 48 * 1024 * 1024  # below v7x's 64 MiB physical, above scoped defaults


def _round_up(a, b):
    return (a + b - 1) // b * b


def _cparams(dimension_semantics):
    return pltpu.CompilerParams(
        dimension_semantics=dimension_semantics,
        vmem_limit_bytes=_VMEM_LIMIT,
    )


# ----------------------------------------------------------------------------
# Pallas kernel 1: fused single-K-block matmul  Y = act(X @ W * scale + bias)
# ----------------------------------------------------------------------------
def _mm_kernel(x_ref, w_ref, s_ref, b_ref, o_ref, *, relu):
    y = jnp.dot(x_ref[...], w_ref[...], preferred_element_type=jnp.float32)
    y = y * s_ref[...] + b_ref[...]
    if relu:
        y = jnp.maximum(y, 0.0)
    o_ref[...] = y


def matmul_scale_bias(x, w, scale, bias, relu):
    """x: (M, K), w: (K, N), scale/bias: (N,) -> (M, N) f32.

    Operands are cast to bf16 (f32 MXU accumulation); K is a single block, so
    there is no reduction grid axis, no accumulator scratch, and the epilogue
    (scale/bias/ReLU) is fused into the same kernel.
    """
    M, K = x.shape
    _, N = w.shape
    assert K <= 4096, "single-K-block matmul only (all GoogLeNet K <= 2048)"
    Kp = _round_up(K, 128)

    Mp8 = _round_up(M, 8)
    if Mp8 <= 1024:
        tm, Mp = Mp8, Mp8          # single M block (incl. tiny batch=2 heads)
    else:
        tm, Mp = 512, _round_up(M, 512)

    if N <= 1024:
        tn, Np = N, N              # single, full (lane-exact) N block
    else:
        tn, Np = 256, _round_up(N, 256)

    xp = jnp.pad(x.astype(jnp.bfloat16), ((0, Mp - M), (0, Kp - K)))
    wp = jnp.pad(w.astype(jnp.bfloat16), ((0, Kp - K), (0, Np - N)))
    sp = jnp.pad(scale.astype(jnp.float32), (0, Np - N)).reshape(1, Np)
    bp = jnp.pad(bias.astype(jnp.float32), (0, Np - N)).reshape(1, Np)

    out = pl.pallas_call(
        functools.partial(_mm_kernel, relu=relu),
        out_shape=jax.ShapeDtypeStruct((Mp, Np), jnp.float32),
        grid_spec=pltpu.PrefetchScalarGridSpec(
            num_scalar_prefetch=0,
            grid=(Mp // tm, Np // tn),
            in_specs=[
                pl.BlockSpec((tm, Kp), lambda i, j: (i, 0)),
                pl.BlockSpec((Kp, tn), lambda i, j: (0, j)),
                pl.BlockSpec((1, tn), lambda i, j: (0, j)),
                pl.BlockSpec((1, tn), lambda i, j: (0, j)),
            ],
            out_specs=pl.BlockSpec((tm, tn), lambda i, j: (i, j)),
        ),
        compiler_params=_cparams(("parallel", "parallel")),
    )(xp, wp, sp, bp)
    return out[:M, :N]


# ----------------------------------------------------------------------------
# Pallas kernel 2: implicit-GEMM stride-1 conv (kxk) + folded BN + ReLU
# ----------------------------------------------------------------------------
def _conv_s1_kernel(x_ref, w_ref, s_ref, b_ref, o_ref, *, k, wp, relu):
    # x_ref: (1, FLAT, Cin) bf16   flat padded image of one batch element
    # w_ref: (k*k, Cin, Cout) bf16 all filter taps
    # o_ref: (1, M, Cout) f32      M = OH * Wp (full padded width; cropped outside)
    m = o_ref.shape[1]
    for kh in range(k):
        for kw in range(k):
            t = kh * k + kw
            sh = kh * wp + kw
            part = jnp.dot(x_ref[0, sh:sh + m, :], w_ref[t],
                           preferred_element_type=jnp.float32)
            if t == 0:
                o_ref[0] = part
            else:
                o_ref[0] += part
    y = o_ref[0] * s_ref[...] + b_ref[...]
    if relu:
        y = jnp.maximum(y, 0.0)
    o_ref[0] = y


def conv_s1(x, p, k, pad, relu=True):
    """kxk stride-1 Conv2d(bias=False) + folded BN + optional ReLU (NHWC)."""
    w, scale, bias = p                     # w: (k, k, Cin, Cout)
    n, h, wd, cin = x.shape
    cout = w.shape[-1]
    hp, wp = h + 2 * pad, wd + 2 * pad
    oh, ow = hp - k + 1, wp - k + 1
    m = oh * wp                            # rows over the full padded width
    flat = hp * wp + (k - 1)               # extra tail so every tap stays in-bounds

    xpad = jnp.pad(x, ((0, 0), (pad, pad), (pad, pad), (0, 0)))
    x2 = jnp.pad(xpad.reshape(n, hp * wp, cin).astype(jnp.bfloat16),
                 ((0, 0), (0, k - 1), (0, 0)))
    wk = w.reshape(k * k, cin, cout).astype(jnp.bfloat16)

    out = pl.pallas_call(
        functools.partial(_conv_s1_kernel, k=k, wp=wp, relu=relu),
        out_shape=jax.ShapeDtypeStruct((n, m, cout), jnp.float32),
        grid_spec=pltpu.PrefetchScalarGridSpec(
            num_scalar_prefetch=0,
            grid=(n,),
            in_specs=[
                pl.BlockSpec((1, flat, cin), lambda i: (i, 0, 0)),
                pl.BlockSpec((k * k, cin, cout), lambda i: (0, 0, 0)),
                pl.BlockSpec((1, cout), lambda i: (0, 0)),
                pl.BlockSpec((1, cout), lambda i: (0, 0)),
            ],
            out_specs=pl.BlockSpec((1, m, cout), lambda i: (i, 0, 0)),
        ),
        compiler_params=_cparams(("parallel",)),
    )(x2, wk, scale.reshape(1, cout), bias.reshape(1, cout))
    return out.reshape(n, oh, wp, cout)[:, :, :ow, :]


# ----------------------------------------------------------------------------
# Pallas kernel 3: pooling (dense stride-1 window reduction in VMEM)
# ----------------------------------------------------------------------------
def _pool_kernel(x_ref, o_ref, *, k, mode):
    ohd, owd = o_ref.shape[1], o_ref.shape[2]
    for kh in range(k):
        for kw in range(k):
            v = x_ref[0, kh:kh + ohd, kw:kw + owd, :]
            if kh == 0 and kw == 0:
                o_ref[0] = v
            elif mode == "max":
                o_ref[0] = jnp.maximum(o_ref[0], v)
            else:
                o_ref[0] += v
    if mode == "avg":
        o_ref[0] *= 1.0 / (k * k)


def pool2d(x, k, stride, pad, mode):
    """MaxPool2d / AvgPool2d (count_include_pad=True); x in NHWC f32.

    The kernel reduces k*k shifted VMEM slices (dense, stride-1); the output
    stride is applied as a cheap XLA subsample afterwards.
    """
    n, h, wd, c = x.shape
    pad_val = -jnp.inf if mode == "max" else 0.0
    xp = jnp.pad(x, ((0, 0), (pad, pad), (pad, pad), (0, 0)),
                 constant_values=pad_val)
    hp, wp = h + 2 * pad, wd + 2 * pad
    ohd, owd = hp - k + 1, wp - k + 1
    dense = pl.pallas_call(
        functools.partial(_pool_kernel, k=k, mode=mode),
        out_shape=jax.ShapeDtypeStruct((n, ohd, owd, c), jnp.float32),
        grid_spec=pltpu.PrefetchScalarGridSpec(
            num_scalar_prefetch=0,
            grid=(n,),
            in_specs=[pl.BlockSpec((1, hp, wp, c), lambda i: (i, 0, 0, 0))],
            out_specs=pl.BlockSpec((1, ohd, owd, c), lambda i: (i, 0, 0, 0)),
        ),
        compiler_params=_cparams(("parallel",)),
    )(xp)
    if stride == 1:
        return dense
    return dense[:, ::stride, ::stride, :]


# ----------------------------------------------------------------------------
# Layer wrappers
# ----------------------------------------------------------------------------
def _extract_windows(x, k, stride, pad, pad_value):
    """x: (N, H, W, C) -> (N, OH, OW, k*k, C). Only used for the strided conv1."""
    n, h, w, c = x.shape
    xp = jnp.pad(x, ((0, 0), (pad, pad), (pad, pad), (0, 0)),
                 constant_values=pad_value)
    hp, wp = h + 2 * pad, w + 2 * pad
    oh = (hp - k) // stride + 1
    ow = (wp - k) // stride + 1
    wins = []
    for kh in range(k):
        for kw in range(k):
            wins.append(
                xp[:, kh: kh + stride * oh: stride, kw: kw + stride * ow: stride, :]
            )
    return jnp.stack(wins, axis=3), oh, ow


def conv_bn_relu(x, p, k, stride, pad, relu=True):
    """Conv2d(bias=False) + folded BatchNorm + optional ReLU. x: NHWC."""
    w, scale, bias = p
    cout = w.shape[-1]
    if k == 1 and stride == 1:
        if pad > 0:
            x = jnp.pad(x, ((0, 0), (pad, pad), (pad, pad), (0, 0)))
        n, h, wd, cin = x.shape
        y = matmul_scale_bias(x.reshape(n * h * wd, cin), w.reshape(cin, cout),
                              scale, bias, relu)
        return y.reshape(n, h, wd, cout)
    if stride == 1:
        return conv_s1(x, p, k, pad, relu)
    # Strided conv (only conv1: 7x7 s2, Cin=3) -> bf16 im2col + fused matmul.
    wins, oh, ow = _extract_windows(x.astype(jnp.bfloat16), k, stride, pad, 0.0)
    n = x.shape[0]
    cin = x.shape[-1]
    patches = wins.reshape(n * oh * ow, k * k * cin)
    y = matmul_scale_bias(patches, w.reshape(k * k * cin, cout), scale, bias, relu)
    return y.reshape(n, oh, ow, cout)


def linear(x, p, relu):
    w, b = p
    scale = jnp.ones((w.shape[1],), jnp.float32)
    return matmul_scale_bias(x, w, scale, b, relu)


# ----------------------------------------------------------------------------
# Parameter construction (deterministic, synthetic)
# ----------------------------------------------------------------------------
def _conv_bn_params(key, k, cin, cout):
    kw, kg, kb, km, kv = jax.random.split(key, 5)
    std = (2.0 / (k * k * cin)) ** 0.5
    w = jax.random.normal(kw, (k, k, cin, cout), jnp.float32) * std
    gamma = jax.random.uniform(kg, (cout,), jnp.float32, 0.9, 1.1)
    beta = jax.random.normal(kb, (cout,), jnp.float32) * 0.05
    mean = jax.random.normal(km, (cout,), jnp.float32) * 0.05
    var = jax.random.uniform(kv, (cout,), jnp.float32, 0.9, 1.1)
    scale = gamma / jnp.sqrt(var + 1e-5)
    bias = beta - mean * scale
    return (w, scale, bias)


def _linear_params(key, fin, fout):
    kw, kb = jax.random.split(key)
    bound = (1.0 / fin) ** 0.5
    w = jax.random.uniform(kw, (fin, fout), jnp.float32, -bound, bound)
    b = jax.random.uniform(kb, (fout,), jnp.float32, -bound, bound)
    return (w, b)


def _inception_params(key, cin, c1, c3r, c3, c5r, c5, cp):
    ks = jax.random.split(key, 6)
    return dict(
        b1=_conv_bn_params(ks[0], 1, cin, c1),
        b2r=_conv_bn_params(ks[1], 1, cin, c3r),
        b2=_conv_bn_params(ks[2], 3, c3r, c3),
        b3r=_conv_bn_params(ks[3], 1, cin, c5r),
        b3=_conv_bn_params(ks[4], 5, c5r, c5),
        b4=_conv_bn_params(ks[5], 1, cin, cp),
    )


def _aux_params(key, cin, conv_out, fc_hidden, num_classes, pooled_hw):
    ks = jax.random.split(key, 3)
    return dict(
        conv=_conv_bn_params(ks[0], 1, cin, conv_out),
        fc1=_linear_params(ks[1], conv_out * pooled_hw * pooled_hw, fc_hidden),
        fc2=_linear_params(ks[2], fc_hidden, num_classes),
    )


def make_googlenet_params(key, num_classes):
    ks = jax.random.split(key, 16)
    return dict(
        conv1=_conv_bn_params(ks[0], 7, 3, 64),
        conv2a=_conv_bn_params(ks[1], 1, 64, 64),
        conv2b=_conv_bn_params(ks[2], 3, 64, 192),
        i3a=_inception_params(ks[3], 192, 64, 96, 128, 16, 32, 32),
        i3b=_inception_params(ks[4], 256, 128, 128, 192, 32, 96, 64),
        i4a=_inception_params(ks[5], 480, 192, 96, 208, 16, 48, 64),
        i4b=_inception_params(ks[6], 512, 160, 112, 224, 24, 64, 64),
        i4c=_inception_params(ks[7], 512, 128, 128, 256, 24, 64, 64),
        i4d=_inception_params(ks[8], 512, 112, 144, 288, 32, 64, 64),
        i4e=_inception_params(ks[9], 528, 256, 160, 320, 32, 128, 128),
        i5a=_inception_params(ks[10], 832, 256, 160, 320, 32, 128, 128),
        i5b=_inception_params(ks[11], 832, 384, 192, 384, 48, 128, 128),
        aux1=_aux_params(ks[12], 512, 128, 1024, num_classes, 4),
        aux2=_aux_params(ks[13], 528, 128, 1024, num_classes, 4),
        cls=_linear_params(ks[14], 1024, num_classes),
    )


# ----------------------------------------------------------------------------
# Model forward (glue in JAX, compute in Pallas kernels)
# ----------------------------------------------------------------------------
def inception_v1(x, p):
    n, h, wd, cin = x.shape
    w1, s1, bb1 = p["b1"]
    w2r, s2r, bb2r = p["b2r"]
    w3r, s3r, bb3r = p["b3r"]
    c1, c3r, c5r = w1.shape[-1], w2r.shape[-1], w3r.shape[-1]

    # Fused 1x1 branches (1x1 + 3x3-reduce + 5x5-reduce share the same input):
    # one matmul with concatenated weights, then slice the channel groups.
    wcat = jnp.concatenate(
        [w1.reshape(cin, c1), w2r.reshape(cin, c3r), w3r.reshape(cin, c5r)], axis=1)
    scat = jnp.concatenate([s1, s2r, s3r])
    bcat = jnp.concatenate([bb1, bb2r, bb3r])
    y = matmul_scale_bias(x.reshape(n * h * wd, cin), wcat, scat, bcat, relu=True)
    y = y.reshape(n, h, wd, c1 + c3r + c5r)

    br1 = y[..., :c1]
    br2 = conv_s1(y[..., c1:c1 + c3r], p["b2"], 3, 1)
    br3 = conv_s1(y[..., c1 + c3r:], p["b3"], 5, 2)
    br4 = pool2d(x, 3, 1, 1, "max")
    br4 = conv_bn_relu(br4, p["b4"], 1, 1, 0)
    return jnp.concatenate([br1, br2, br3, br4], axis=-1)


def aux_classifier(x, p):
    y = pool2d(x, 5, 3, 0, "avg")               # 14x14 -> 4x4
    y = conv_bn_relu(y, p["conv"], 1, 1, 0)     # -> 128 channels
    y = y.reshape(y.shape[0], -1)               # flatten (HWC order; synthetic weights)
    y = linear(y, p["fc1"], relu=True)
    # Dropout(eval) = identity
    y = linear(y, p["fc2"], relu=False)
    return y


def googlenet_forward(x_nchw, params):
    x = jnp.transpose(x_nchw, (0, 2, 3, 1)).astype(jnp.float32)  # NCHW -> NHWC

    x = conv_bn_relu(x, params["conv1"], 7, 2, 3)        # 224 -> 112
    x = pool2d(x, 3, 2, 1, "max")                        # -> 56
    x = conv_bn_relu(x, params["conv2a"], 1, 1, 1)       # 1x1 conv, padding=1 (per spec) -> 58
    x = conv_bn_relu(x, params["conv2b"], 3, 1, 1)       # -> 58
    x = pool2d(x, 3, 2, 0, "max")                        # -> 28

    x = inception_v1(x, params["i3a"])
    x = inception_v1(x, params["i3b"])
    x = pool2d(x, 3, 2, 1, "max")                        # -> 14

    x = inception_v1(x, params["i4a"])
    aux1 = aux_classifier(x, params["aux1"])             # aux on input of 4b (512 ch)
    x = inception_v1(x, params["i4b"])
    x = inception_v1(x, params["i4c"])
    x = inception_v1(x, params["i4d"])
    aux2 = aux_classifier(x, params["aux2"])             # aux on input of 4e (528 ch)
    x = inception_v1(x, params["i4e"])
    x = pool2d(x, 3, 2, 1, "max")                        # -> 7

    x = inception_v1(x, params["i5a"])
    x = inception_v1(x, params["i5b"])
    x = pool2d(x, 7, 1, 0, "avg")                        # -> 1x1 (Dropout eval = id)
    x = x.reshape(x.shape[0], -1)                        # (N, 1024)
    out = linear(x, params["cls"], relu=False)
    return aux1, aux2, out


# ----------------------------------------------------------------------------
# main
# ----------------------------------------------------------------------------
if __name__ == "__main__":
    num_classes = 10
    key = jax.random.PRNGKey(0)
    k_in, k_params = jax.random.split(key)

    # The architecture (AvgPool2d(7) + Linear(1024, ...)) pins the input to
    # 3 x 224 x 224; batch kept small (2).
    x = jax.random.normal(k_in, (2, 3, 224, 224), jnp.float32)
    params = make_googlenet_params(k_params, num_classes)

    aux1, aux2, out = googlenet_forward(x, params)
    jax.block_until_ready((aux1, aux2, out))

    assert aux1.shape == (2, num_classes)
    assert aux2.shape == (2, num_classes)
    assert out.shape == (2, num_classes)
    print("KERNEL_OK")
</pallas_src>

<mosaic_0001>
module attributes {stable_mosaic.version = 11 : i64} {
  func.func @_mm_kernel(%arg0: i32, %arg1: i32, %arg2: memref<512x256xbf16, #tpu.memory_space<vmem>>, %arg3: memref<256x64xbf16, #tpu.memory_space<vmem>>, %arg4: memref<1x64xf32, #tpu.memory_space<vmem>>, %arg5: memref<1x64xf32, #tpu.memory_space<vmem>>, %arg6: memref<512x64xf32, #tpu.memory_space<vmem>>) attributes {dimension_semantics = [#tpu.dimension_semantics<parallel>, #tpu.dimension_semantics<parallel>], iteration_bounds = array<i64: 49, 1>, scalar_prefetch = 0 : i64, scratch_operands = 0 : i64, tpu.core_type = #tpu.core_type<tc>, window_params = [{transform_indices = @transform_0, window_bounds = array<i64: 512, 256>}, {transform_indices = @transform_1, window_bounds = array<i64: 256, 64>}, {transform_indices = @transform_2, window_bounds = array<i64: 1, 64>}, {transform_indices = @transform_3, window_bounds = array<i64: 1, 64>}, {transform_indices = @transform_4, window_bounds = array<i64: 512, 64>}]} {
    %c0 = arith.constant 0 : index
    %c0_0 = arith.constant 0 : index
    %0 = vector.load %arg2[%c0, %c0_0] : memref<512x256xbf16, #tpu.memory_space<vmem>>, vector<512x256xbf16>
    %c0_1 = arith.constant 0 : index
    %c0_2 = arith.constant 0 : index
    %1 = vector.load %arg3[%c0_1, %c0_2] : memref<256x64xbf16, #tpu.memory_space<vmem>>, vector<256x64xbf16>
    %cst = arith.constant dense<0.000000e+00> : vector<512x64xf32>
    %2 = tpu.matmul %0, %1, %cst {dimension_numbers = #tpu.dot_dimension_numbers<[1], [0], [0], [1], [0, 0, 1, 1], [], []>} : vector<512x256xbf16>, vector<256x64xbf16>, vector<512x64xf32> -> vector<512x64xf32>
    %c0_3 = arith.constant 0 : index
    %c0_4 = arith.constant 0 : index
    %3 = vector.load %arg4[%c0_3, %c0_4] : memref<1x64xf32, #tpu.memory_space<vmem>>, vector<1x64xf32>
    %4 = vector.broadcast %3 : vector<1x64xf32> to vector<512x64xf32>
    %5 = arith.mulf %2, %4 : vector<512x64xf32>
    %c0_5 = arith.constant 0 : index
    %c0_6 = arith.constant 0 : index
    %6 = vector.load %arg5[%c0_5, %c0_6] : memref<1x64xf32, #tpu.memory_space<vmem>>, vector<1x64xf32>
    %7 = vector.broadcast %6 : vector<1x64xf32> to vector<512x64xf32>
    %8 = arith.addf %5, %7 : vector<512x64xf32>
    %cst_7 = arith.constant 0.000000e+00 : f32
    %9 = vector.broadcast %cst_7 : f32 to vector<512x64xf32>
    %10 = arith.maximumf %8, %9 : vector<512x64xf32>
    %c0_8 = arith.constant 0 : index
    %c0_9 = arith.constant 0 : index
    %11 = vector.load %arg6[%c0_8, %c0_9] : memref<512x64xf32, #tpu.memory_space<vmem>>, vector<512x64xf32>
    tpu.vector_store %arg6[%c0_8, %c0_9], %10 {strides = array<i32>} : memref<512x64xf32, #tpu.memory_space<vmem>>, vector<512x64xf32>,
    return
  }
  func.func @transform_0(%arg0: i32, %arg1: i32) -> (i32, i32) {
    %c0_i32 = arith.constant 0 : i32
    %c0_i32_0 = arith.constant 0 : i32
    return %arg0, %c0_i32 : i32, i32
  }
  func.func @transform_1(%arg0: i32, %arg1: i32) -> (i32, i32) {
    %c0_i32 = arith.constant 0 : i32
    %c0_i32_0 = arith.constant 0 : i32
    return %c0_i32, %arg1 : i32, i32
  }
  func.func @transform_2(%arg0: i32, %arg1: i32) -> (i32, i32) {
    %c0_i32 = arith.constant 0 : i32
    %c0_i32_0 = arith.constant 0 : i32
    return %c0_i32, %arg1 : i32, i32
  }
  func.func @transform_3(%arg0: i32, %arg1: i32) -> (i32, i32) {
    %c0_i32 = arith.constant 0 : i32
    %c0_i32_0 = arith.constant 0 : i32
    return %c0_i32, %arg1 : i32, i32
  }
  func.func @transform_4(%arg0: i32, %arg1: i32) -> (i32, i32) {
    %c0_i32 = arith.constant 0 : i32
    return %arg0, %arg1 : i32, i32
  }
}

</mosaic_0001>

<llo_original>
// kernel: tpu_custom_call.1
$region0: #{tpu_custom_call.1}
  #allocation0 [shape = 'u32[]', space=smem, size = 0x4, offset = 0x4, fixed_abs, tag = 'smem constant byte address 0x4 - core index']
  #allocation1 [shape = 'u32[144,128]{1,0:T(1,128)}', space=vmem, size = 0x12000, scoped, tag = 'internal scratch']
  %s0 = inlined_call_operand.hbm [shape: bf16[25088,256], index: 0, kind: input, shape index: {}]
  %s1 = inlined_call_operand.vmem [shape: bf16[256,64], index: 1, kind: input, shape index: {}]
  %s2 = inlined_call_operand.hbm [shape: f32[1,64], index: 2, kind: input, shape index: {}]
  %s3 = inlined_call_operand.hbm [shape: f32[1,64], index: 3, kind: input, shape index: {}]
  %s4 = inlined_call_operand.vmem [shape: f32[25088,64], index: 4, kind: output, shape index: {}]
  %s5 = sld [smem:[#allocation0]]
  $region61: #{tpu_custom_call.1} parent=0
    _
  %s7 = ssub.s32 1, %s5
  %s8 = scalar_select 0, %s7, %s5
  $region1: #{tpu_custom_call.1} parent=0
    #allocation2 [shape = 'u8[524288]{0}', space=vmem, size = 0x80000, scoped, tag = 'input window, operand 0']
    #allocation3 [shape = 's32[2]{0}', space=sflag, size = 0x8, scoped, tag = 'scoped memory for tpu_custom_call.1']
    #allocation4 [shape = 'u8[512]{0}', space=vmem, size = 0x400, scoped, tag = 'input window, operand 2, single buffered']
    #allocation5 [shape = 's32[1]{0}', space=sflag, size = 0x4, scoped, tag = 'scoped memory for tpu_custom_call.1']
    #allocation6 [shape = 'u8[512]{0}', space=vmem, size = 0x400, scoped, tag = 'input window, operand 3, single buffered']
    %9 = vsyncpa [#allocation3], 0
    %s10 = scalar_lea.sflag [#allocation3], 1
    %11 = vsyncpa %s10, 0
    %12 = vsyncpa [#allocation5], 0
    loop: start=0, step=1, limit=51
    $region2: #{tpu_custom_call.1} parent=1 // loop_pre_header
      _
    $region3: #{tpu_custom_call.1} parent=1 // loop_header
      %s14 = sphi 0, %s18
      %p15 = scmp.ge.s32.totalorder %s14, 51
      %s21 = sphi 0, %s33
      %s22 = sphi 0, %s29
      %s23 = sphi 0, %s21
      %s24 = sphi 0, %s22
      %s25 = sphi 0, %s23
      %s26 = sphi 0, %s24
      %s36 = sphi 0, %s38
      %s39 = sphi 0, %s36
      %s40 = sphi 0, %s39
      %s56 = sphi 0, %s40
      %s62 = sphi 0, %s64
      %s65 = sphi 0, %s62
      %s66 = sphi 0, %s65
      %s82 = sphi 0, %s66
      %s88 = sphi 0, %s90
      %s91 = sphi 0, %s88
      %s92 = sphi 0, %s91
      %s108 = sphi 0, %s92
      %s114 = sphi 0, %s116
      %s117 = sphi 0, %s114
      %s118 = sphi 0, %s117
      %s134 = sphi 0, %s118
      %s142 = sphi 0, %s144
      %s145 = sphi 0, %s142
      %s146 = sphi 0, %s145
      %s162 = sphi 0, %s146
    $region4: #{tpu_custom_call.1} parent=1 // loop_header_branch
      %17 = sbr.rel (%p15) target = $region8
    $region5: #{tpu_custom_call.1} parent=1 // loop_body
      %s19 = ssub.s32 %s14, 1
      %s20 = ssub.s32 %s14, 2
      %s27 = sadd.s32 1, %s22
      %p28 = scmp.ge.s32.totalorder %s27, 1
      %s29 = scalar_select %p28, 0, %s27
      %s30 = sadd.s32 1, %s21
      %s31 = scalar_select %p28, %s30, %s21
      %p32 = scmp.ge.s32.totalorder %s31, 49
      %s33 = scalar_select %p32, 0, %s31
      %s34 = ssub.s32 %s21, %s33
      %p35 = scmp.eq.s32.totalorder %s34, 0
      %s37 = sadd.s32 %s36, 1
      %s38 = scalar_select %p35, %s36, %s37
      %p41 = pneg %p35
      %p42 = scmp.eq.s32.totalorder %s14, 48
      %p43 = por %p41, %p42
      %p44 = scmp.ne.s32.totalorder %s36, %s39
      %p45 = scmp.eq.s32.totalorder %s14, 0
      %p46 = por %p44, %p45
      %p47 = scmp.ne.s32.totalorder %s36, %s39
      %p48 = scmp.eq.s32.totalorder %s19, 48
      %p49 = por %p47, %p48
      %p50 = scmp.ne.s32.totalorder %s39, %s40
      %p51 = scmp.eq.s32.totalorder %s19, 0
      %p52 = por %p50, %p51
      %p53 = scmp.ne.s32.totalorder %s39, %s40
      %p54 = scmp.eq.s32.totalorder %s20, 48
      %p55 = por %p53, %p54
      %p57 = scmp.ne.s32.totalorder %s40, %s56
      %p58 = scmp.eq.s32.totalorder %s20, 0
      %p59 = por %p57, %p58
      %s60 = ssub.s32 %s22, %s29
      %p61 = scmp.eq.s32.totalorder %s60, 0
      %s63 = sadd.s32 %s62, 1
      %s64 = scalar_select %p61, %s62, %s63
      %p67 = pneg %p61
      %p68 = scmp.eq.s32.totalorder %s14, 48
      %p69 = por %p67, %p68
      %p70 = scmp.ne.s32.totalorder %s62, %s65
      %p71 = scmp.eq.s32.totalorder %s14, 0
      %p72 = por %p70, %p71
      %p73 = scmp.ne.s32.totalorder %s62, %s65
      %p74 = scmp.eq.s32.totalorder %s19, 48
      %p75 = por %p73, %p74
      %p76 = scmp.ne.s32.totalorder %s65, %s66
      %p77 = scmp.eq.s32.totalorder %s19, 0
      %p78 = por %p76, %p77
      %p79 = scmp.ne.s32.totalorder %s65, %s66
      %p80 = scmp.eq.s32.totalorder %s20, 48
      %p81 = por %p79, %p80
      %p83 = scmp.ne.s32.totalorder %s66, %s82
      %p84 = scmp.eq.s32.totalorder %s20, 0
      %p85 = por %p83, %p84
      %s86 = ssub.s32 %s22, %s29
      %p87 = scmp.eq.s32.totalorder %s86, 0
      %s89 = sadd.s32 %s88, 1
      %s90 = scalar_select %p87, %s88, %s89
      %p93 = pneg %p87
      %p94 = scmp.eq.s32.totalorder %s14, 48
      %p95 = por %p93, %p94
      %p96 = scmp.ne.s32.totalorder %s88, %s91
      %p97 = scmp.eq.s32.totalorder %s14, 0
      %p98 = por %p96, %p97
      %p99 = scmp.ne.s32.totalorder %s88, %s91
      %p100 = scmp.eq.s32.totalorder %s19, 48
      %p101 = por %p99, %p100
      %p102 = scmp.ne.s32.totalorder %s91, %s92
      %p103 = scmp.eq.s32.totalorder %s19, 0
      %p104 = por %p102, %p103
      %p105 = scmp.ne.s32.totalorder %s91, %s92
      %p106 = scmp.eq.s32.totalorder %s20, 48
      %p107 = por %p105, %p106
      %p109 = scmp.ne.s32.totalorder %s92, %s108
      %p110 = scmp.eq.s32.totalorder %s20, 0
      %p111 = por %p109, %p110
      %s112 = ssub.s32 %s22, %s29
      %p113 = scmp.eq.s32.totalorder %s112, 0
      %s115 = sadd.s32 %s114, 1
      %s116 = scalar_select %p113, %s114, %s115
      %p119 = pneg %p113
      %p120 = scmp.eq.s32.totalorder %s14, 48
      %p121 = por %p119, %p120
      %p122 = scmp.ne.s32.totalorder %s114, %s117
      %p123 = scmp.eq.s32.totalorder %s14, 0
      %p124 = por %p122, %p123
      %p125 = scmp.ne.s32.totalorder %s114, %s117
      %p126 = scmp.eq.s32.totalorder %s19, 48
      %p127 = por %p125, %p126
      %p128 = scmp.ne.s32.totalorder %s117, %s118
      %p129 = scmp.eq.s32.totalorder %s19, 0
      %p130 = por %p128, %p129
      %p131 = scmp.ne.s32.totalorder %s117, %s118
      %p132 = scmp.eq.s32.totalorder %s20, 48
      %p133 = por %p131, %p132
      %p135 = scmp.ne.s32.totalorder %s118, %s134
      %p136 = scmp.eq.s32.totalorder %s20, 0
      %p137 = por %p135, %p136
      %s138 = ssub.s32 %s21, %s33
      %s139 = ssub.s32 %s22, %s29
      %s140 = sor.u32 %s138, %s139
      %p141 = scmp.eq.s32.totalorder %s140, 0
      %s143 = sadd.s32 %s142, 1
      %s144 = scalar_select %p141, %s142, %s143
      %p147 = pneg %p141
      %p148 = scmp.eq.s32.totalorder %s14, 48
      %p149 = por %p147, %p148
      %p150 = scmp.ne.s32.totalorder %s142, %s145
      %p151 = scmp.eq.s32.totalorder %s14, 0
      %p152 = por %p150, %p151
      %p153 = scmp.ne.s32.totalorder %s142, %s145
      %p154 = scmp.eq.s32.totalorder %s19, 48
      %p155 = por %p153, %p154
      %p156 = scmp.ne.s32.totalorder %s145, %s146
      %p157 = scmp.eq.s32.totalorder %s19, 0
      %p158 = por %p156, %p157
      %p159 = scmp.ne.s32.totalorder %s145, %s146
      %p160 = scmp.eq.s32.totalorder %s20, 48
      %p161 = por %p159, %p160
      %p163 = scmp.ne.s32.totalorder %s146, %s162
      %p164 = scmp.eq.s32.totalorder %s20, 0
      %p165 = por %p163, %p164
      %p166 = scmp.le.s32.totalorder 1, %s14
      %p167 = scmp.lt.s32.totalorder %s14, 50
      %p168 = pnand %p166, %p167
      %p169 = pneg %p168
      // Predicated region
      $region9: #{tpu_custom_call.1} parent=5 // pred_check
        _
      $region10: #{tpu_custom_call.1} parent=5 // pred_check_branch
        %171 = sbr.rel (%p168) target = $region12
      $region11: #{tpu_custom_call.1} parent=5 // pred_region
        %s172 = ssub.s32 %s14, 1
        // Predicated region
        $region13: #{tpu_custom_call.1} parent=11 // pred_check
          %p173 = pneg %p78
        $region14: #{tpu_custom_call.1} parent=11 // pred_check_branch
          %175 = sbr.rel (%p173) target = $region16
        $region15: #{tpu_custom_call.1} parent=11 // pred_region
          %p176 = scmp.lt.s32.totalorder %s24, 0
          %s177 = scalar_select %p176, %s24, 0
          %s178 = smul.addr %s177, 4
          %s179 = scalar_lea.vmem %s1, %s178
        $region16: #{tpu_custom_call.1} parent=11 // pred_fallthru
          _
        // Predicated region
        $region17: #{tpu_custom_call.1} parent=11 // pred_check
          %p180 = pneg %p104
        $region18: #{tpu_custom_call.1} parent=11 // pred_check_branch
          %182 = sbr.rel (%p180) target = $region20
        $region19: #{tpu_custom_call.1} parent=11 // pred_region
          %s184 = ssub.s32 16, 16
          %185 = vsyncadd [#allocation5], %s184
          %s186 = smul.addr %s24, 16
          %s187 = scalar_lea.hbm %s2, %s186
          %s189 = sshll.u32 [#allocation4], 4
          %s190 = int_to_ptr.vmem [resolvable:$true] %s189
          %192 = dma.hbm_to_vmem [thread:$0]  %s187, 16, %s190, [#allocation5]
        $region20: #{tpu_custom_call.1} parent=11 // pred_fallthru
          _
        // Predicated region
        $region21: #{tpu_custom_call.1} parent=11 // pred_check
          %p193 = pneg %p130
        $region22: #{tpu_custom_call.1} parent=11 // pred_check_branch
          %195 = sbr.rel (%p193) target = $region24
        $region23: #{tpu_custom_call.1} parent=11 // pred_region
          %s197 = ssub.s32 16, 16
          %198 = vsyncadd [#allocation5], %s197
          %s199 = smul.addr %s24, 16
          %s200 = scalar_lea.hbm %s3, %s199
          %s202 = sshll.u32 [#allocation6], 4
          %s203 = int_to_ptr.vmem [resolvable:$true] %s202
          %205 = dma.hbm_to_vmem [thread:$0]  %s200, 16, %s203, [#allocation5]
        $region24: #{tpu_custom_call.1} parent=11 // pred_fallthru
          _
      $region12: #{tpu_custom_call.1} parent=5 // pred_fallthru
        _
      %p206 = scmp.lt.s32.totalorder %s14, 49
      // Predicated region
      $region25: #{tpu_custom_call.1} parent=5 // pred_check
        %p207 = pneg %p206
      $region26: #{tpu_custom_call.1} parent=5 // pred_check_branch
        %209 = sbr.rel (%p207) target = $region28
      $region27: #{tpu_custom_call.1} parent=5 // pred_region
        // Predicated region
        $region29: #{tpu_custom_call.1} parent=27 // pred_check
          %p210 = pneg %p46
        $region30: #{tpu_custom_call.1} parent=27 // pred_check_branch
          %212 = sbr.rel (%p210) target = $region32
        $region31: #{tpu_custom_call.1} parent=27 // pred_region
          %s213 = sand.u32 %s36, 1
          %s214 = scalar_lea.sflag [#allocation3], %s213
          %s215 = sand.u32 %s36, 1
          %s216 = smul.addr %s215, 512
          %s217 = scalar_lea.vmem [#allocation2], %s216
          %s218 = smul.u32 64, %s21
          %s220 = ssub.s32 8192, 8192
          %221 = vsyncadd %s214, %s220
          %s222 = smul.addr %s218, 2
          %s223 = smul.addr %s222, 64
          %s224 = scalar_lea.hbm %s0, %s223
          %s225 = sshll.u32 %s217, 4
          %s226 = int_to_ptr.vmem [resolvable:$true] %s225
          %231 = dma.hbm_to_vmem [thread:$0]  %s224, 8192, %s226, %s214, 128, 128, 8
        $region32: #{tpu_custom_call.1} parent=27 // pred_fallthru
          _
      $region28: #{tpu_custom_call.1} parent=5 // pred_fallthru
        _
      %p232 = scmp.le.s32.totalorder 1, %s14
      %p233 = scmp.lt.s32.totalorder %s14, 50
      %p234 = pnand %p232, %p233
      %p235 = pneg %p234
      // Predicated region
      $region33: #{tpu_custom_call.1} parent=5 // pred_check
        _
      $region34: #{tpu_custom_call.1} parent=5 // pred_check_branch
        %237 = sbr.rel (%p234) target = $region36
      $region35: #{tpu_custom_call.1} parent=5 // pred_region
        %s238 = ssub.s32 %s14, 1
        %s239 = sand.u32 %s39, 1
        %s240 = scalar_lea.sflag [#allocation3], %s239
        %s241 = sand.u32 %s39, 1
        %s242 = smul.addr %s241, 512
        %s243 = scalar_lea.vmem [#allocation2], %s242
        // Predicated region
        $region37: #{tpu_custom_call.1} parent=35 // pred_check
          %p244 = pneg %p52
        $region38: #{tpu_custom_call.1} parent=35 // pred_check_branch
          %246 = sbr.rel (%p244) target = $region40
        $region39: #{tpu_custom_call.1} parent=35 // pred_region
          %247 = dma.done %s240, 8192
        $region40: #{tpu_custom_call.1} parent=35 // pred_fallthru
          _
        // Predicated region
        $region41: #{tpu_custom_call.1} parent=35 // pred_check
          %p248 = pneg %p104
        $region42: #{tpu_custom_call.1} parent=35 // pred_check_branch
          %250 = sbr.rel (%p248) target = $region44
        $region43: #{tpu_custom_call.1} parent=35 // pred_region
          %251 = dma.done [#allocation5], 16
        $region44: #{tpu_custom_call.1} parent=35 // pred_fallthru
          _
        // Predicated region
        $region45: #{tpu_custom_call.1} parent=35 // pred_check
          %p252 = pneg %p130
        $region46: #{tpu_custom_call.1} parent=35 // pred_check_branch
          %254 = sbr.rel (%p252) target = $region48
        $region47: #{tpu_custom_call.1} parent=35 // pred_region
          %255 = dma.done [#allocation5], 16
        $region48: #{tpu_custom_call.1} parent=35 // pred_fallthru
          _
        %s256 = sand.u32 %s39, 1
        %s257 = scalar_lea.sflag [#allocation3], %s256
        %s258 = sand.u32 %s39, 1
        %s259 = smul.addr %s258, 512
        %s260 = scalar_lea.vmem [#allocation2], %s259
        %p261 = pneg %p52
        %p262 = pneg %p49
        %p263 = scmp.lt.s32.totalorder %s24, 0
        %s264 = scalar_select %p263, %s24, 0
        %s265 = smul.addr %s264, 4
        %s266 = scalar_lea.vmem %s1, %s265
        %p267 = pneg %p78
        %p268 = pneg %p75
        %p269 = pneg %p104
        %p270 = pneg %p101
        %p271 = pneg %p130
        %p272 = pneg %p127
        %p273 = pneg %p158
        %p274 = pneg %p155
        %s275 = smul.u32 64, %s23
        %p276 = scmp.lt.s32.totalorder %s275, 3135
        %s277 = scalar_select %p276, %s275, 3135
        %p278 = scmp.lt.s32.totalorder %s24, 0
        %s279 = scalar_select %p278, %s24, 0
        %s280 = sadd.s32 %s279, %s277
        %s281 = smul.addr %s280, 8
        %s282 = scalar_lea.vmem %s4, %s281
        %s283 = smul.u32 64, %s23
        %p284 = scmp.lt.s32.totalorder %s24, 0
        %s285 = scalar_select %p284, %s24, 0
        %s286 = smul.addr %s285, 4
        %s287 = scalar_lea.vmem %s1, %s286
        %s288 = smul.u32 64, %s23
        %p289 = scmp.lt.s32.totalorder %s288, 3135
        %s290 = scalar_select %p289, %s288, 3135
        %p291 = scmp.lt.s32.totalorder %s24, 0
        %s292 = scalar_select %p291, %s24, 0
        %s293 = sadd.s32 %s292, %s290
        %s294 = smul.addr %s293, 8
        %s295 = scalar_lea.vmem %s4, %s294
        %s296 = smul.u32 64, %s23
        %v298 = vld [vmem:[%s243] sm:$0xff]
        %v299 = vld [vmem:[%s243 + $0x8] sm:$0xff]
        %v300 = vld [vmem:[%s243 + $0x10] sm:$0xff]
        %v301 = vld [vmem:[%s243 + $0x18] sm:$0xff]
        %v302 = vld [vmem:[%s243 + $0x20] sm:$0xff]
        %v303 = vld [vmem:[%s243 + $0x28] sm:$0xff]
        %v304 = vld [vmem:[%s243 + $0x30] sm:$0xff]
        %v305 = vld [vmem:[%s243 + $0x38] sm:$0xff]
        %v306 = vld [vmem:[%s243 + $0x40] sm:$0xff]
        %v307 = vld [vmem:[%s243 + $0x48] sm:$0xff]
        %v308 = vld [vmem:[%s243 + $0x50] sm:$0xff]
        %v309 = vld [vmem:[%s243 + $0x58] sm:$0xff]
        %v310 = vld [vmem:[%s243 + $0x60] sm:$0xff]
        %v311 = vld [vmem:[%s243 + $0x68] sm:$0xff]
        %v312 = vld [vmem:[%s243 + $0x70] sm:$0xff]
        %v313 = vld [vmem:[%s243 + $0x78] sm:$0xff]
        %v314 = vld [vmem:[%s243 + $0x80] sm:$0xff]
        %v315 = vld [vmem:[%s243 + $0x88] sm:$0xff]
        %v316 = vld [vmem:[%s243 + $0x90] sm:$0xff]
        %v317 = vld [vmem:[%s243 + $0x98] sm:$0xff]
        %v318 = vld [vmem:[%s243 + $0xa0] sm:$0xff]
        %v319 = vld [vmem:[%s243 + $0xa8] sm:$0xff]
        %v320 = vld [vmem:[%s243 + $0xb0] sm:$0xff]
        %v321 = vld [vmem:[%s243 + $0xb8] sm:$0xff]
        %v322 = vld [vmem:[%s243 + $0xc0] sm:$0xff]
        %v323 = vld [vmem:[%s243 + $0xc8] sm:$0xff]
        %v324 = vld [vmem:[%s243 + $0xd0] sm:$0xff]
        %v325 = vld [vmem:[%s243 + $0xd8] sm:$0xff]
        %v326 = vld [vmem:[%s243 + $0xe0] sm:$0xff]
        %v327 = vld [vmem:[%s243 + $0xe8] sm:$0xff]
        %v328 = vld [vmem:[%s243 + $0xf0] sm:$0xff]
        %v329 = vld [vmem:[%s243 + $0xf8] sm:$0xff]
        %v330 = vld [vmem:[%s243 + $0x100] sm:$0xff]
        %v331 = vld [vmem:[%s243 + $0x108] sm:$0xff]
        %v332 = vld [vmem:[%s243 + $0x110] sm:$0xff]
        %v333 = vld [vmem:[%s243 + $0x118] sm:$0xff]
        %v334 = vld [vmem:[%s243 + $0x120] sm:$0xff]
        %v335 = vld [vmem:[%s243 + $0x128] sm:$0xff]
        %v336 = vld [vmem:[%s243 + $0x130] sm:$0xff]
        %v337 = vld [vmem:[%s243 + $0x138] sm:$0xff]
        %v338 = vld [vmem:[%s243 + $0x140] sm:$0xff]
        %v339 = vld [vmem:[%s243 + $0x148] sm:$0xff]
        %v340 = vld [vmem:[%s243 + $0x150] sm:$0xff]
        %v341 = vld [vmem:[%s243 + $0x158] sm:$0xff]
        %v342 = vld [vmem:[%s243 + $0x160] sm:$0xff]
        %v343 = vld [vmem:[%s243 + $0x168] sm:$0xff]
        %v344 = vld [vmem:[%s243 + $0x170] sm:$0xff]
        %v345 = vld [vmem:[%s243 + $0x178] sm:$0xff]
        %v346 = vld [vmem:[%s243 + $0x180] sm:$0xff]
        %v347 = vld [vmem:[%s243 + $0x188] sm:$0xff]
        %v348 = vld [vmem:[%s243 + $0x190] sm:$0xff]
        %v349 = vld [vmem:[%s243 + $0x198] sm:$0xff]
        %v350 = vld [vmem:[%s243 + $0x1a0] sm:$0xff]
        %v351 = vld [vmem:[%s243 + $0x1a8] sm:$0xff]
        %v352 = vld [vmem:[%s243 + $0x1b0] sm:$0xff]
        %v353 = vld [vmem:[%s243 + $0x1b8] sm:$0xff]
        %v354 = vld [vmem:[%s243 + $0x1c0] sm:$0xff]
        %v355 = vld [vmem:[%s243 + $0x1c8] sm:$0xff]
        %v356 = vld [vmem:[%s243 + $0x1d0] sm:$0xff]
        %v357 = vld [vmem:[%s243 + $0x1d8] sm:$0xff]
        %v358 = vld [vmem:[%s243 + $0x1e0] sm:$0xff]
        %v359 = vld [vmem:[%s243 + $0x1e8] sm:$0xff]
        %v360 = vld [vmem:[%s243 + $0x1f0] sm:$0xff]
        %v361 = vld [vmem:[%s243 + $0x1f8] sm:$0xff]
        %v362 = vld [vmem:[%s287] sm:$0xf]
        %v363 = vld [vmem:[%s287 + $0x4] sm:$0xf]
        %v364 = vld [vmem:[%s287 + $0x8] sm:$0xf]
        %v365 = vld [vmem:[%s287 + $0xc] sm:$0xf]
        %v366 = vld [vmem:[%s287 + $0x10] sm:$0xf]
        %v367 = vld [vmem:[%s287 + $0x14] sm:$0xf]
        %v368 = vld [vmem:[%s287 + $0x18] sm:$0xf]
        %v369 = vld [vmem:[%s287 + $0x1c] sm:$0xf]
        %v370 = vld [vmem:[%s287 + $0x20] sm:$0xf]
        %v371 = vld [vmem:[%s287 + $0x24] sm:$0xf]
        %v372 = vld [vmem:[%s287 + $0x28] sm:$0xf]
        %v373 = vld [vmem:[%s287 + $0x2c] sm:$0xf]
        %v374 = vld [vmem:[%s287 + $0x30] sm:$0xf]
        %v375 = vld [vmem:[%s287 + $0x34] sm:$0xf]
        %v376 = vld [vmem:[%s287 + $0x38] sm:$0xf]
        %v377 = vld [vmem:[%s287 + $0x3c] sm:$0xf]
        %v378 = vld [vmem:[%s287 + $0x40] sm:$0xf]
        %v379 = vld [vmem:[%s287 + $0x44] sm:$0xf]
        %v380 = vld [vmem:[%s287 + $0x48] sm:$0xf]
        %v381 = vld [vmem:[%s287 + $0x4c] sm:$0xf]
        %v382 = vld [vmem:[%s287 + $0x50] sm:$0xf]
        %v383 = vld [vmem:[%s287 + $0x54] sm:$0xf]
        %v384 = vld [vmem:[%s287 + $0x58] sm:$0xf]
        %v385 = vld [vmem:[%s287 + $0x5c] sm:$0xf]
        %v386 = vld [vmem:[%s287 + $0x60] sm:$0xf]
        %v387 = vld [vmem:[%s287 + $0x64] sm:$0xf]
        %v388 = vld [vmem:[%s287 + $0x68] sm:$0xf]
        %v389 = vld [vmem:[%s287 + $0x6c] sm:$0xf]
        %v390 = vld [vmem:[%s287 + $0x70] sm:$0xf]
        %v391 = vld [vmem:[%s287 + $0x74] sm:$0xf]
        %v392 = vld [vmem:[%s287 + $0x78] sm:$0xf]
        %v393 = vld [vmem:[%s287 + $0x7c] sm:$0xf]
        %v458 = vunpack.c.l.b16 %v298
        %v459 = vunpack.c.h.b16 %v298
        %v460 = vunpack.c.l.b16 %v299
        %v461 = vunpack.c.h.b16 %v299
        %v462 = vunpack.c.l.b16 %v300
        %v463 = vunpack.c.h.b16 %v300
        %v464 = vunpack.c.l.b16 %v301
        %v465 = vunpack.c.h.b16 %v301
        %v466 = vunpack.c.l.b16 %v302
        %v467 = vunpack.c.h.b16 %v302
        %v468 = vunpack.c.l.b16 %v303
        %v469 = vunpack.c.h.b16 %v303
        %v470 = vunpack.c.l.b16 %v304
        %v471 = vunpack.c.h.b16 %v304
        %v472 = vunpack.c.l.b16 %v305
        %v473 = vunpack.c.h.b16 %v305
        %v474 = vunpack.c.l.b16 %v306
        %v475 = vunpack.c.h.b16 %v306
        %v476 = vunpack.c.l.b16 %v307
        %v477 = vunpack.c.h.b16 %v307
        %v478 = vunpack.c.l.b16 %v308
        %v479 = vunpack.c.h.b16 %v308
        %v480 = vunpack.c.l.b16 %v309
        %v481 = vunpack.c.h.b16 %v309
        %v482 = vunpack.c.l.b16 %v310
        %v483 = vunpack.c.h.b16 %v310
        %v484 = vunpack.c.l.b16 %v311
        %v485 = vunpack.c.h.b16 %v311
        %v486 = vunpack.c.l.b16 %v312
        %v487 = vunpack.c.h.b16 %v312
        %v488 = vunpack.c.l.b16 %v313
        %v489 = vunpack.c.h.b16 %v313
        %v490 = vunpack.c.l.b16 %v314
        %v491 = vunpack.c.h.b16 %v314
        %v492 = vunpack.c.l.b16 %v315
        %v493 = vunpack.c.h.b16 %v315
        %v494 = vunpack.c.l.b16 %v316
        %v495 = vunpack.c.h.b16 %v316
        %v496 = vunpack.c.l.b16 %v317
        %v497 = vunpack.c.h.b16 %v317
        %v498 = vunpack.c.l.b16 %v318
        %v499 = vunpack.c.h.b16 %v318
        %v500 = vunpack.c.l.b16 %v319
        %v501 = vunpack.c.h.b16 %v319
        %v502 = vunpack.c.l.b16 %v320
        %v503 = vunpack.c.h.b16 %v320
        %v504 = vunpack.c.l.b16 %v321
        %v505 = vunpack.c.h.b16 %v321
        %v506 = vunpack.c.l.b16 %v322
        %v507 = vunpack.c.h.b16 %v322
        %v508 = vunpack.c.l.b16 %v323
        %v509 = vunpack.c.h.b16 %v323
        %v510 = vunpack.c.l.b16 %v324
        %v511 = vunpack.c.h.b16 %v324
        %v512 = vunpack.c.l.b16 %v325
        %v513 = vunpack.c.h.b16 %v325
        %v514 = vunpack.c.l.b16 %v326
        %v515 = vunpack.c.h.b16 %v326
        %v516 = vunpack.c.l.b16 %v327
        %v517 = vunpack.c.h.b16 %v327
        %v518 = vunpack.c.l.b16 %v328
        %v519 = vunpack.c.h.b16 %v328
        %v520 = vunpack.c.l.b16 %v329
        %v521 = vunpack.c.h.b16 %v329
        %v522 = vunpack.c.l.b16 %v330
        %v523 = vunpack.c.h.b16 %v330
        %v524 = vunpack.c.l.b16 %v331
        %v525 = vunpack.c.h.b16 %v331
        %v526 = vunpack.c.l.b16 %v332
        %v527 = vunpack.c.h.b16 %v332
        %v528 = vunpack.c.l.b16 %v333
        %v529 = vunpack.c.h.b16 %v333
        %v530 = vunpack.c.l.b16 %v334
        %v531 = vunpack.c.h.b16 %v334
        %v532 = vunpack.c.l.b16 %v335
        %v533 = vunpack.c.h.b16 %v335
        %v534 = vunpack.c.l.b16 %v336
        %v535 = vunpack.c.h.b16 %v336
        %v536 = vunpack.c.l.b16 %v337
        %v537 = vunpack.c.h.b16 %v337
        %v538 = vunpack.c.l.b16 %v338
        %v539 = vunpack.c.h.b16 %v338
        %v540 = vunpack.c.l.b16 %v339
        %v541 = vunpack.c.h.b16 %v339
        %v542 = vunpack.c.l.b16 %v340
        %v543 = vunpack.c.h.b16 %v340
        %v544 = vunpack.c.l.b16 %v341
        %v545 = vunpack.c.h.b16 %v341
        %v546 = vunpack.c.l.b16 %v342
        %v547 = vunpack.c.h.b16 %v342
        %v548 = vunpack.c.l.b16 %v343
        %v549 = vunpack.c.h.b16 %v343
        %v550 = vunpack.c.l.b16 %v344
        %v551 = vunpack.c.h.b16 %v344
        %v552 = vunpack.c.l.b16 %v345
        %v553 = vunpack.c.h.b16 %v345
        %v554 = vunpack.c.l.b16 %v346
        %v555 = vunpack.c.h.b16 %v346
        %v556 = vunpack.c.l.b16 %v347
        %v557 = vunpack.c.h.b16 %v347
        %v558 = vunpack.c.l.b16 %v348
        %v559 = vunpack.c.h.b16 %v348
        %v560 = vunpack.c.l.b16 %v349
        %v561 = vunpack.c.h.b16 %v349
        %v562 = vunpack.c.l.b16 %v350
        %v563 = vunpack.c.h.b16 %v350
        %v564 = vunpack.c.l.b16 %v351
        %v565 = vunpack.c.h.b16 %v351
        %v566 = vunpack.c.l.b16 %v352
        %v567 = vunpack.c.h.b16 %v352
        %v568 = vunpack.c.l.b16 %v353
        %v569 = vunpack.c.h.b16 %v353
        %v570 = vunpack.c.l.b16 %v354
        %v571 = vunpack.c.h.b16 %v354
        %v572 = vunpack.c.l.b16 %v355
        %v573 = vunpack.c.h.b16 %v355
        %v574 = vunpack.c.l.b16 %v356
        %v575 = vunpack.c.h.b16 %v356
        %v576 = vunpack.c.l.b16 %v357
        %v577 = vunpack.c.h.b16 %v357
        %v578 = vunpack.c.l.b16 %v358
        %v579 = vunpack.c.h.b16 %v358
        %v580 = vunpack.c.l.b16 %v359
        %v581 = vunpack.c.h.b16 %v359
        %v582 = vunpack.c.l.b16 %v360
        %v583 = vunpack.c.h.b16 %v360
        %v584 = vunpack.c.l.b16 %v361
        %v585 = vunpack.c.h.b16 %v361
        %v586 = vpack.c.b16 %v460, %v458
        %v587 = vpack.c.b16 %v461, %v459
        %v588 = vpack.c.b16 %v464, %v462
        %v589 = vpack.c.b16 %v465, %v463
        %v590 = vpack.c.b16 %v468, %v466
        %v591 = vpack.c.b16 %v469, %v467
        %v592 = vpack.c.b16 %v472, %v470
        %v593 = vpack.c.b16 %v473, %v471
        %v594 = vpack.c.b16 %v476, %v474
        %v595 = vpack.c.b16 %v477, %v475
        %v596 = vpack.c.b16 %v480, %v478
        %v597 = vpack.c.b16 %v481, %v479
        %v598 = vpack.c.b16 %v484, %v482
        %v599 = vpack.c.b16 %v485, %v483
        %v600 = vpack.c.b16 %v488, %v486
        %v601 = vpack.c.b16 %v489, %v487
        %v602 = vpack.c.b16 %v492, %v490
        %v603 = vpack.c.b16 %v493, %v491
        %v604 = vpack.c.b16 %v496, %v494
        %v605 = vpack.c.b16 %v497, %v495
        %v606 = vpack.c.b16 %v500, %v498
        %v607 = vpack.c.b16 %v501, %v499
        %v608 = vpack.c.b16 %v504, %v502
        %v609 = vpack.c.b16 %v505, %v503
        %v610 = vpack.c.b16 %v508, %v506
        %v611 = vpack.c.b16 %v509, %v507
        %v612 = vpack.c.b16 %v512, %v510
        %v613 = vpack.c.b16 %v513, %v511
        %v614 = vpack.c.b16 %v516, %v514
        %v615 = vpack.c.b16 %v517, %v515
        %v616 = vpack.c.b16 %v520, %v518
        %v617 = vpack.c.b16 %v521, %v519
        %v618 = vpack.c.b16 %v524, %v522
        %v619 = vpack.c.b16 %v525, %v523
        %v620 = vpack.c.b16 %v528, %v526
        %v621 = vpack.c.b16 %v529, %v527
        %v622 = vpack.c.b16 %v532, %v530
        %v623 = vpack.c.b16 %v533, %v531
        %v624 = vpack.c.b16 %v536, %v534
        %v625 = vpack.c.b16 %v537, %v535
        %v626 = vpack.c.b16 %v540, %v538
        %v627 = vpack.c.b16 %v541, %v539
        %v628 = vpack.c.b16 %v544, %v542
        %v629 = vpack.c.b16 %v545, %v543
        %v630 = vpack.c.b16 %v548, %v546
        %v631 = vpack.c.b16 %v549, %v547
        %v632 = vpack.c.b16 %v552, %v550
        %v633 = vpack.c.b16 %v553, %v551
        %v634 = vpack.c.b16 %v556, %v554
        %v635 = vpack.c.b16 %v557, %v555
        %v636 = vpack.c.b16 %v560, %v558
        %v637 = vpack.c.b16 %v561, %v559
        %v638 = vpack.c.b16 %v564, %v562
        %v639 = vpack.c.b16 %v565, %v563
        %v640 = vpack.c.b16 %v568, %v566
        %v641 = vpack.c.b16 %v569, %v567
        %v642 = vpack.c.b16 %v572, %v570
        %v643 = vpack.c.b16 %v573, %v571
        %v644 = vpack.c.b16 %v576, %v574
        %v645 = vpack.c.b16 %v577, %v575
        %v646 = vpack.c.b16 %v580, %v578
        %v647 = vpack.c.b16 %v581, %v579
        %v648 = vpack.c.b16 %v584, %v582
        %v649 = vpack.c.b16 %v585, %v583
        %v746 = vunpack.c.l.b16 %v362
        %v747 = vunpack.c.l.b16 %v363
        %v748 = vunpack.c.l.b16 %v364
        %v749 = vunpack.c.l.b16 %v365
        %v750 = vunpack.c.l.b16 %v366
        %v751 = vunpack.c.l.b16 %v367
        %v752 = vunpack.c.l.b16 %v368
        %v753 = vunpack.c.l.b16 %v369
        %v754 = vunpack.c.l.b16 %v370
        %v755 = vunpack.c.l.b16 %v371
        %v756 = vunpack.c.l.b16 %v372
        %v757 = vunpack.c.l.b16 %v373
        %v758 = vunpack.c.l.b16 %v374
        %v759 = vunpack.c.l.b16 %v375
        %v760 = vunpack.c.l.b16 %v376
        %v761 = vunpack.c.l.b16 %v377
        %v762 = vunpack.c.l.b16 %v378
        %v763 = vunpack.c.l.b16 %v379
        %v764 = vunpack.c.l.b16 %v380
        %v765 = vunpack.c.l.b16 %v381
        %v766 = vunpack.c.l.b16 %v382
        %v767 = vunpack.c.l.b16 %v383
        %v768 = vunpack.c.l.b16 %v384
        %v769 = vunpack.c.l.b16 %v385
        %v770 = vunpack.c.l.b16 %v386
        %v771 = vunpack.c.l.b16 %v387
        %v772 = vunpack.c.l.b16 %v388
        %v773 = vunpack.c.l.b16 %v389
        %v774 = vunpack.c.l.b16 %v390
        %v775 = vunpack.c.l.b16 %v391
        %v776 = vunpack.c.l.b16 %v392
        %v777 = vunpack.c.l.b16 %v393
        %v778 = vpack.c.b16 %v747, %v746
        %v779 = vpack.c.b16 %v749, %v748
        %v780 = vpack.c.b16 %v751, %v750
        %v781 = vpack.c.b16 %v753, %v752
        %v782 = vpack.c.b16 %v755, %v754
        %v783 = vpack.c.b16 %v757, %v756
        %v784 = vpack.c.b16 %v759, %v758
        %v785 = vpack.c.b16 %v761, %v760
        %v786 = vpack.c.b16 %v763, %v762
        %v787 = vpack.c.b16 %v765, %v764
        %v788 = vpack.c.b16 %v767, %v766
        %v789 = vpack.c.b16 %v769, %v768
        %v790 = vpack.c.b16 %v771, %v770
        %v791 = vpack.c.b16 %v773, %v772
        %v792 = vpack.c.b16 %v775, %v774
        %v793 = vpack.c.b16 %v777, %v776
        %810 = vmatprep.subr.bf16.mxu0 0
        %811 = vmatpush1.bf16.msra.mxu0 %v778
        %812 = vmatprep.subr.bf16.mxu0 0
        %813 = vmatpush1.bf16.msra.mxu0 %v779
        %814 = vmatprep.subr.bf16.mxu0 0
        %815 = vmatpush1.bf16.msra.mxu0 %v780
        %816 = vmatprep.subr.bf16.mxu0 0
        %817 = vmatpush1.bf16.msra.mxu0 %v781
        %818 = vmatprep.subr.bf16.mxu0 0
        %819 = vmatpush1.bf16.msra.mxu0 %v782
        %820 = vmatprep.subr.bf16.mxu0 0
        %821 = vmatpush1.bf16.msra.mxu0 %v783
        %822 = vmatprep.subr.bf16.mxu0 0
        %823 = vmatpush1.bf16.msra.mxu0 %v784
        %824 = vmatprep.subr.bf16.mxu0 0
        %825 = vmatpush1.bf16.msra.mxu0 %v785
        %826 = vmatprep.subr.bf16.mxu0 0
        %827 = vmatpush1.bf16.msra.mxu0 %v786
        %828 = vmatprep.subr.bf16.mxu0 0
        %829 = vmatpush1.bf16.msra.mxu0 %v787
        %830 = vmatprep.subr.bf16.mxu0 0
        %831 = vmatpush1.bf16.msra.mxu0 %v788
        %832 = vmatprep.subr.bf16.mxu0 0
        %833 = vmatpush1.bf16.msra.mxu0 %v789
        %834 = vmatprep.subr.bf16.mxu0 0
        %835 = vmatpush1.bf16.msra.mxu0 %v790
        %836 = vmatprep.subr.bf16.mxu0 0
        %837 = vmatpush1.bf16.msra.mxu0 %v791
        %838 = vmatprep.subr.bf16.mxu0 0
        %839 = vmatpush1.bf16.msra.mxu0 %v792
        %840 = vmatprep.subr.bf16.mxu0 0
        %841 = vmatpush1.bf16.msra.mxu0 %v793
        %842 = vmatprep.mubr.bf16.mxu0 %v587
        %843 = vmatmul.mubr.bf16.gmra.mrb[0].mxu0 %v586
        %v844 = vpop.f32.mrb[0].mxu0
        %v845 = vadd.f32 0.0, %v844
        %v846 = vpop.f32.mrb[0].mxu0
        %v847 = vpop.f32.mrb[0].mxu0
        %v848 = vadd.f32 0.0, %v847
        %v849 = vpop.f32.mrb[0].mxu0
        %850 = vmatprep.mubr.bf16.mxu0 %v589
        %851 = vmatmul.mubr.bf16.gmra.mrb[0].mxu0 %v588
        %v852 = vpop.f32.mrb[0].mxu0
        %v853 = vadd.f32 0.0, %v852
        %v854 = vpop.f32.mrb[0].mxu0
        %v855 = vpop.f32.mrb[0].mxu0
        %v856 = vadd.f32 0.0, %v855
        %v857 = vpop.f32.mrb[0].mxu0
        %858 = vmatprep.mubr.bf16.mxu0 %v591
        %859 = vmatmul.mubr.bf16.gmra.mrb[0].mxu0 %v590
        %v860 = vpop.f32.mrb[0].mxu0
        %v861 = vadd.f32 0.0, %v860
        %v862 = vpop.f32.mrb[0].mxu0
        %v863 = vpop.f32.mrb[0].mxu0
        %v864 = vadd.f32 0.0, %v863
        %v865 = vpop.f32.mrb[0].mxu0
        %866 = vmatprep.mubr.bf16.mxu0 %v593
        %867 = vmatmul.mubr.bf16.gmra.mrb[0].mxu0 %v592
        %v868 = vpop.f32.mrb[0].mxu0
        %v869 = vadd.f32 0.0, %v868
        %v870 = vpop.f32.mrb[0].mxu0
        %v871 = vpop.f32.mrb[0].mxu0
        %v872 = vadd.f32 0.0, %v871
        %v873 = vpop.f32.mrb[0].mxu0
        %874 = vmatprep.mubr.bf16.mxu0 %v595
        %875 = vmatmul.mubr.bf16.gmra.mrb[0].mxu0 %v594
        %v876 = vpop.f32.mrb[0].mxu0
        %v877 = vadd.f32 0.0, %v876
        %v878 = vpop.f32.mrb[0].mxu0
        %v879 = vpop.f32.mrb[0].mxu0
        %v880 = vadd.f32 0.0, %v879
        %v881 = vpop.f32.mrb[0].mxu0
        %882 = vmatprep.mubr.bf16.mxu0 %v597
        %883 = vmatmul.mubr.bf16.gmra.mrb[0].mxu0 %v596
        %v884 = vpop.f32.mrb[0].mxu0
        %v885 = vadd.f32 0.0, %v884
        %v886 = vpop.f32.mrb[0].mxu0
        %v887 = vpop.f32.mrb[0].mxu0
        %v888 = vadd.f32 0.0, %v887
        %v889 = vpop.f32.mrb[0].mxu0
        %890 = vmatprep.mubr.bf16.mxu0 %v599
        %891 = vmatmul.mubr.bf16.gmra.mrb[0].mxu0 %v598
        %v892 = vpop.f32.mrb[0].mxu0
        %v893 = vadd.f32 0.0, %v892
        %v894 = vpop.f32.mrb[0].mxu0
        %v895 = vpop.f32.mrb[0].mxu0
        %v896 = vadd.f32 0.0, %v895
        %v897 = vpop.f32.mrb[0].mxu0
        %898 = vmatprep.mubr.bf16.mxu0 %v601
        %899 = vmatmul.mubr.bf16.gmra.mrb[0].mxu0 %v600
        %v900 = vpop.f32.mrb[0].mxu0
        %v901 = vadd.f32 0.0, %v900
        %v902 = vpop.f32.mrb[0].mxu0
        %v903 = vpop.f32.mrb[0].mxu0
        %v904 = vadd.f32 0.0, %v903
        %v905 = vpop.f32.mrb[0].mxu0
        %906 = vmatprep.mubr.bf16.mxu0 %v603
        %907 = vmatmul.mubr.bf16.gmra.mrb[0].mxu0 %v602
        %v908 = vpop.f32.mrb[0].mxu0
        %v909 = vadd.f32 0.0, %v908
        %v910 = vpop.f32.mrb[0].mxu0
        %v911 = vpop.f32.mrb[0].mxu0
        %v912 = vadd.f32 0.0, %v911
        %v913 = vpop.f32.mrb[0].mxu0
        %914 = vmatprep.mubr.bf16.mxu0 %v605
        %915 = vmatmul.mubr.bf16.gmra.mrb[0].mxu0 %v604
        %v916 = vpop.f32.mrb[0].mxu0
        %v917 = vadd.f32 0.0, %v916
        %v918 = vpop.f32.mrb[0].mxu0
        %v919 = vpop.f32.mrb[0].mxu0
        %v920 = vadd.f32 0.0, %v919
        %v921 = vpop.f32.mrb[0].mxu0
        %922 = vmatprep.mubr.bf16.mxu0 %v607
        %923 = vmatmul.mubr.bf16.gmra.mrb[0].mxu0 %v606
        %v924 = vpop.f32.mrb[0].mxu0
        %v925 = vadd.f32 0.0, %v924
        %v926 = vpop.f32.mrb[0].mxu0
        %v927 = vpop.f32.mrb[0].mxu0
        %v928 = vadd.f32 0.0, %v927
        %v929 = vpop.f32.mrb[0].mxu0
        %930 = vmatprep.mubr.bf16.mxu0 %v609
        %931 = vmatmul.mubr.bf16.gmra.mrb[0].mxu0 %v608
        %v932 = vpop.f32.mrb[0].mxu0
        %v933 = vadd.f32 0.0, %v932
        %v934 = vpop.f32.mrb[0].mxu0
        %v935 = vpop.f32.mrb[0].mxu0
        %v936 = vadd.f32 0.0, %v935
        %v937 = vpop.f32.mrb[0].mxu0
        %938 = vmatprep.mubr.bf16.mxu0 %v611
        %939 = vmatmul.mubr.bf16.gmra.mrb[0].mxu0 %v610
        %v940 = vpop.f32.mrb[0].mxu0
        %v941 = vadd.f32 0.0, %v940
        %v942 = vpop.f32.mrb[0].mxu0
        %v943 = vpop.f32.mrb[0].mxu0
        %v944 = vadd.f32 0.0, %v943
        %v945 = vpop.f32.mrb[0].mxu0
        %946 = vmatprep.mubr.bf16.mxu0 %v613
        %947 = vmatmul.mubr.bf16.gmra.mrb[0].mxu0 %v612
        %v948 = vpop.f32.mrb[0].mxu0
        %v949 = vadd.f32 0.0, %v948
        %v950 = vpop.f32.mrb[0].mxu0
        %v951 = vpop.f32.mrb[0].mxu0
        %v952 = vadd.f32 0.0, %v951
        %v953 = vpop.f32.mrb[0].mxu0
        %954 = vmatprep.mubr.bf16.mxu0 %v615
        %955 = vmatmul.mubr.bf16.gmra.mrb[0].mxu0 %v614
        %v956 = vpop.f32.mrb[0].mxu0
        %v957 = vadd.f32 0.0, %v956
        %v958 = vpop.f32.mrb[0].mxu0
        %v959 = vpop.f32.mrb[0].mxu0
        %v960 = vadd.f32 0.0, %v959
        %v961 = vpop.f32.mrb[0].mxu0
        %962 = vmatprep.mubr.bf16.mxu0 %v617
        %963 = vmatmul.mubr.bf16.gmra.mrb[0].mxu0 %v616
        %v964 = vpop.f32.mrb[0].mxu0
        %v965 = vadd.f32 0.0, %v964
        %v966 = vpop.f32.mrb[0].mxu0
        %v967 = vpop.f32.mrb[0].mxu0
        %v968 = vadd.f32 0.0, %v967
        %v969 = vpop.f32.mrb[0].mxu0
        %970 = vmatprep.mubr.bf16.mxu0 %v619
        %971 = vmatmul.mubr.bf16.gmra.mrb[0].mxu0 %v618
        %v972 = vpop.f32.mrb[0].mxu0
        %v973 = vadd.f32 0.0, %v972
        %v974 = vpop.f32.mrb[0].mxu0
        %v975 = vpop.f32.mrb[0].mxu0
        %v976 = vadd.f32 0.0, %v975
        %v977 = vpop.f32.mrb[0].mxu0
        %978 = vmatprep.mubr.bf16.mxu0 %v621
        %979 = vmatmul.mubr.bf16.gmra.mrb[0].mxu0 %v620
        %v980 = vpop.f32.mrb[0].mxu0
        %v981 = vadd.f32 0.0, %v980
        %v982 = vpop.f32.mrb[0].mxu0
        %v983 = vpop.f32.mrb[0].mxu0
        %v984 = vadd.f32 0.0, %v983
        %v985 = vpop.f32.mrb[0].mxu0
        %986 = vmatprep.mubr.bf16.mxu0 %v623
        %987 = vmatmul.mubr.bf16.gmra.mrb[0].mxu0 %v622
        %v988 = vpop.f32.mrb[0].mxu0
        %v989 = vadd.f32 0.0, %v988
        %v990 = vpop.f32.mrb[0].mxu0
        %v991 = vpop.f32.mrb[0].mxu0
        %v992 = vadd.f32 0.0, %v991
        %v993 = vpop.f32.mrb[0].mxu0
        %994 = vmatprep.mubr.bf16.mxu0 %v625
        %995 = vmatmul.mubr.bf16.gmra.mrb[0].mxu0 %v624
        %v996 = vpop.f32.mrb[0].mxu0
        %v997 = vadd.f32 0.0, %v996
        %v998 = vpop.f32.mrb[0].mxu0
        %v999 = vpop.f32.mrb[0].mxu0
        %v1000 = vadd.f32 0.0, %v999
        %v1001 = vpop.f32.mrb[0].mxu0
        %1002 = vmatprep.mubr.bf16.mxu0 %v627
        %1003 = vmatmul.mubr.bf16.gmra.mrb[0].mxu0 %v626
        %v1004 = vpop.f32.mrb[0].mxu0
        %v1005 = vadd.f32 0.0, %v1004
        %v1006 = vpop.f32.mrb[0].mxu0
        %v1007 = vpop.f32.mrb[0].mxu0
        %v1008 = vadd.f32 0.0, %v1007
        %v1009 = vpop.f32.mrb[0].mxu0
        %1010 = vmatprep.mubr.bf16.mxu0 %v629
        %1011 = vmatmul.mubr.bf16.gmra.mrb[0].mxu0 %v628
        %v1012 = vpop.f32.mrb[0].mxu0
        %v1013 = vadd.f32 0.0, %v1012
        %v1014 = vpop.f32.mrb[0].mxu0
        %v1015 = vpop.f32.mrb[0].mxu0
        %v1016 = vadd.f32 0.0, %v1015
        %v1017 = vpop.f32.mrb[0].mxu0
        %1018 = vmatprep.mubr.bf16.mxu0 %v631
        %1019 = vmatmul.mubr.bf16.gmra.mrb[0].mxu0 %v630
        %v1020 = vpop.f32.mrb[0].mxu0
        %v1021 = vadd.f32 0.0, %v1020
        %v1022 = vpop.f32.mrb[0].mxu0
        %v1023 = vpop.f32.mrb[0].mxu0
        %v1024 = vadd.f32 0.0, %v1023
        %v1025 = vpop.f32.mrb[0].mxu0
        %1026 = vmatprep.mubr.bf16.mxu0 %v633
        %1027 = vmatmul.mubr.bf16.gmra.mrb[0].mxu0 %v632
        %v1028 = vpop.f32.mrb[0].mxu0
        %v1029 = vadd.f32 0.0, %v1028
        %v1030 = vpop.f32.mrb[0].mxu0
        %v1031 = vpop.f32.mrb[0].mxu0
        %v1032 = vadd.f32 0.0, %v1031
        %v1033 = vpop.f32.mrb[0].mxu0
        %1034 = vmatprep.mubr.bf16.mxu0 %v635
        %1035 = vmatmul.mubr.bf16.gmra.mrb[0].mxu0 %v634
        %v1036 = vpop.f32.mrb[0].mxu0
        %v1037 = vadd.f32 0.0, %v1036
        %v1038 = vpop.f32.mrb[0].mxu0
        %v1039 = vpop.f32.mrb[0].mxu0
        %v1040 = vadd.f32 0.0, %v1039
        %v1041 = vpop.f32.mrb[0].mxu0
        %1042 = vmatprep.mubr.bf16.mxu0 %v637
        %1043 = vmatmul.mubr.bf16.gmra.mrb[0].mxu0 %v636
        %v1044 = vpop.f32.mrb[0].mxu0
        %v1045 = vadd.f32 0.0, %v1044
        %v1046 = vpop.f32.mrb[0].mxu0
        %v1047 = vpop.f32.mrb[0].mxu0
        %v1048 = vadd.f32 0.0, %v1047
        %v1049 = vpop.f32.mrb[0].mxu0
        %1050 = vmatprep.mubr.bf16.mxu0 %v639
        %1051 = vmatmul.mubr.bf16.gmra.mrb[0].mxu0 %v638
        %v1052 = vpop.f32.mrb[0].mxu0
        %v1053 = vadd.f32 0.0, %v1052
        %v1054 = vpop.f32.mrb[0].mxu0
        %v1055 = vpop.f32.mrb[0].mxu0
        %v1056 = vadd.f32 0.0, %v1055
        %v1057 = vpop.f32.mrb[0].mxu0
        %1058 = vmatprep.mubr.bf16.mxu0 %v641
        %1059 = vmatmul.mubr.bf16.gmra.mrb[0].mxu0 %v640
        %v1060 = vpop.f32.mrb[0].mxu0
        %v1061 = vadd.f32 0.0, %v1060
        %v1062 = vpop.f32.mrb[0].mxu0
        %v1063 = vpop.f32.mrb[0].mxu0
        %v1064 = vadd.f32 0.0, %v1063
        %v1065 = vpop.f32.mrb[0].mxu0
        %1066 = vmatprep.mubr.bf16.mxu0 %v643
        %1067 = vmatmul.mubr.bf16.gmra.mrb[0].mxu0 %v642
        %v1068 = vpop.f32.mrb[0].mxu0
        %v1069 = vadd.f32 0.0, %v1068
        %v1070 = vpop.f32.mrb[0].mxu0
        %v1071 = vpop.f32.mrb[0].mxu0
        %v1072 = vadd.f32 0.0, %v1071
        %v1073 = vpop.f32.mrb[0].mxu0
        %1074 = vmatprep.mubr.bf16.mxu0 %v645
        %1075 = vmatmul.mubr.bf16.gmra.mrb[0].mxu0 %v644
        %v1076 = vpop.f32.mrb[0].mxu0
        %v1077 = vadd.f32 0.0, %v1076
        %v1078 = vpop.f32.mrb[0].mxu0
        %v1079 = vpop.f32.mrb[0].mxu0
        %v1080 = vadd.f32 0.0, %v1079
        %v1081 = vpop.f32.mrb[0].mxu0
        %1082 = vmatprep.mubr.bf16.mxu0 %v647
        %1083 = vmatmul.mubr.bf16.gmra.mrb[0].mxu0 %v646
        %v1084 = vpop.f32.mrb[0].mxu0
        %v1085 = vadd.f32 0.0, %v1084
        %v1086 = vpop.f32.mrb[0].mxu0
        %v1087 = vpop.f32.mrb[0].mxu0
        %v1088 = vadd.f32 0.0, %v1087
        %v1089 = vpop.f32.mrb[0].mxu0
        %1090 = vmatprep.mubr.bf16.mxu0 %v649
        %1091 = vmatmul.mubr.bf16.gmra.mrb[0].mxu0 %v648
        %v1092 = vpop.f32.mrb[0].mxu0
        %v1093 = vadd.f32 0.0, %v1092
        %v1094 = vpop.f32.mrb[0].mxu0
        %v1095 = vpop.f32.mrb[0].mxu0
        %v1096 = vadd.f32 0.0, %v1095
        %v1097 = vpop.f32.mrb[0].mxu0
        %1098 = vdwg.mxu0
        %v1099 = vld [vmem:[#allocation4] sm:$0x1]
        %v1101 = vlaneseq
        %v1102 = vshrl.u32 %v1101, 7
        %v1103 = vsub.s32 0, %v1102
        %v1104 = vrot.slane %v1099, %v1103
        %v1106 = vmul.f32 %v845, %v1104
        %v1107 = vmul.f32 %v848, %v1104
        %v1108 = vmul.f32 %v853, %v1104
        %v1109 = vmul.f32 %v856, %v1104
        %v1110 = vmul.f32 %v861, %v1104
        %v1111 = vmul.f32 %v864, %v1104
        %v1112 = vmul.f32 %v869, %v1104
        %v1113 = vmul.f32 %v872, %v1104
        %v1114 = vmul.f32 %v877, %v1104
        %v1115 = vmul.f32 %v880, %v1104
        %v1116 = vmul.f32 %v885, %v1104
        %v1117 = vmul.f32 %v888, %v1104
        %v1118 = vmul.f32 %v893, %v1104
        %v1119 = vmul.f32 %v896, %v1104
        %v1120 = vmul.f32 %v901, %v1104
        %v1121 = vmul.f32 %v904, %v1104
        %v1122 = vmul.f32 %v909, %v1104
        %v1123 = vmul.f32 %v912, %v1104
        %v1124 = vmul.f32 %v917, %v1104
        %v1125 = vmul.f32 %v920, %v1104
        %v1126 = vmul.f32 %v925, %v1104
        %v1127 = vmul.f32 %v928, %v1104
        %v1128 = vmul.f32 %v933, %v1104
        %v1129 = vmul.f32 %v936, %v1104
        %v1130 = vmul.f32 %v941, %v1104
        %v1131 = vmul.f32 %v944, %v1104
        %v1132 = vmul.f32 %v949, %v1104
        %v1133 = vmul.f32 %v952, %v1104
        %v1134 = vmul.f32 %v957, %v1104
        %v1135 = vmul.f32 %v960, %v1104
        %v1136 = vmul.f32 %v965, %v1104
        %v1137 = vmul.f32 %v968, %v1104
        %v1138 = vmul.f32 %v973, %v1104
        %v1139 = vmul.f32 %v976, %v1104
        %v1140 = vmul.f32 %v981, %v1104
        %v1141 = vmul.f32 %v984, %v1104
        %v1142 = vmul.f32 %v989, %v1104
        %v1143 = vmul.f32 %v992, %v1104
        %v1144 = vmul.f32 %v997, %v1104
        %v1145 = vmul.f32 %v1000, %v1104
        %v1146 = vmul.f32 %v1005, %v1104
        %v1147 = vmul.f32 %v1008, %v1104
        %v1148 = vmul.f32 %v1013, %v1104
        %v1149 = vmul.f32 %v1016, %v1104
        %v1150 = vmul.f32 %v1021, %v1104
        %v1151 = vmul.f32 %v1024, %v1104
        %v1152 = vmul.f32 %v1029, %v1104
        %v1153 = vmul.f32 %v1032, %v1104
        %v1154 = vmul.f32 %v1037, %v1104
        %v1155 = vmul.f32 %v1040, %v1104
        %v1156 = vmul.f32 %v1045, %v1104
        %v1157 = vmul.f32 %v1048, %v1104
        %v1158 = vmul.f32 %v1053, %v1104
        %v1159 = vmul.f32 %v1056, %v1104
        %v1160 = vmul.f32 %v1061, %v1104
        %v1161 = vmul.f32 %v1064, %v1104
        %v1162 = vmul.f32 %v1069, %v1104
        %v1163 = vmul.f32 %v1072, %v1104
        %v1164 = vmul.f32 %v1077, %v1104
        %v1165 = vmul.f32 %v1080, %v1104
        %v1166 = vmul.f32 %v1085, %v1104
        %v1167 = vmul.f32 %v1088, %v1104
        %v1168 = vmul.f32 %v1093, %v1104
        %v1169 = vmul.f32 %v1096, %v1104
        %v1170 = vld [vmem:[#allocation6] sm:$0x1]
        %v1172 = vlaneseq
        %v1173 = vshrl.u32 %v1172, 7
        %v1174 = vsub.s32 0, %v1173
        %v1175 = vrot.slane %v1170, %v1174
        %v1177 = vadd.f32 %v1106, %v1175
        %v1178 = vadd.f32 %v1107, %v1175
        %v1179 = vadd.f32 %v1108, %v1175
        %v1180 = vadd.f32 %v1109, %v1175
        %v1181 = vadd.f32 %v1110, %v1175
        %v1182 = vadd.f32 %v1111, %v1175
        %v1183 = vadd.f32 %v1112, %v1175
        %v1184 = vadd.f32 %v1113, %v1175
        %v1185 = vadd.f32 %v1114, %v1175
        %v1186 = vadd.f32 %v1115, %v1175
        %v1187 = vadd.f32 %v1116, %v1175
        %v1188 = vadd.f32 %v1117, %v1175
        %v1189 = vadd.f32 %v1118, %v1175
        %v1190 = vadd.f32 %v1119, %v1175
        %v1191 = vadd.f32 %v1120, %v1175
        %v1192 = vadd.f32 %v1121, %v1175
        %v1193 = vadd.f32 %v1122, %v1175
        %v1194 = vadd.f32 %v1123, %v1175
        %v1195 = vadd.f32 %v1124, %v1175
        %v1196 = vadd.f32 %v1125, %v1175
        %v1197 = vadd.f32 %v1126, %v1175
        %v1198 = vadd.f32 %v1127, %v1175
        %v1199 = vadd.f32 %v1128, %v1175
        %v1200 = vadd.f32 %v1129, %v1175
        %v1201 = vadd.f32 %v1130, %v1175
        %v1202 = vadd.f32 %v1131, %v1175
        %v1203 = vadd.f32 %v1132, %v1175
        %v1204 = vadd.f32 %v1133, %v1175
        %v1205 = vadd.f32 %v1134, %v1175
        %v1206 = vadd.f32 %v1135, %v1175
        %v1207 = vadd.f32 %v1136, %v1175
        %v1208 = vadd.f32 %v1137, %v1175
        %v1209 = vadd.f32 %v1138, %v1175
        %v1210 = vadd.f32 %v1139, %v1175
        %v1211 = vadd.f32 %v1140, %v1175
        %v1212 = vadd.f32 %v1141, %v1175
        %v1213 = vadd.f32 %v1142, %v1175
        %v1214 = vadd.f32 %v1143, %v1175
        %v1215 = vadd.f32 %v1144, %v1175
        %v1216 = vadd.f32 %v1145, %v1175
        %v1217 = vadd.f32 %v1146, %v1175
        %v1218 = vadd.f32 %v1147, %v1175
        %v1219 = vadd.f32 %v1148, %v1175
        %v1220 = vadd.f32 %v1149, %v1175
        %v1221 = vadd.f32 %v1150, %v1175
        %v1222 = vadd.f32 %v1151, %v1175
        %v1223 = vadd.f32 %v1152, %v1175
        %v1224 = vadd.f32 %v1153, %v1175
        %v1225 = vadd.f32 %v1154, %v1175
        %v1226 = vadd.f32 %v1155, %v1175
        %v1227 = vadd.f32 %v1156, %v1175
        %v1228 = vadd.f32 %v1157, %v1175
        %v1229 = vadd.f32 %v1158, %v1175
        %v1230 = vadd.f32 %v1159, %v1175
        %v1231 = vadd.f32 %v1160, %v1175
        %v1232 = vadd.f32 %v1161, %v1175
        %v1233 = vadd.f32 %v1162, %v1175
        %v1234 = vadd.f32 %v1163, %v1175
        %v1235 = vadd.f32 %v1164, %v1175
        %v1236 = vadd.f32 %v1165, %v1175
        %v1237 = vadd.f32 %v1166, %v1175
        %v1238 = vadd.f32 %v1167, %v1175
        %v1239 = vadd.f32 %v1168, %v1175
        %v1240 = vadd.f32 %v1169, %v1175
        %v1241 = vmax.f32 %v1177, 0.0
        %v1242 = vmax.f32 %v1178, 0.0
        %v1243 = vmax.f32 %v1179, 0.0
        %v1244 = vmax.f32 %v1180, 0.0
        %v1245 = vmax.f32 %v1181, 0.0
        %v1246 = vmax.f32 %v1182, 0.0
        %v1247 = vmax.f32 %v1183, 0.0
        %v1248 = vmax.f32 %v1184, 0.0
        %v1249 = vmax.f32 %v1185, 0.0
        %v1250 = vmax.f32 %v1186, 0.0
        %v1251 = vmax.f32 %v1187, 0.0
        %v1252 = vmax.f32 %v1188, 0.0
        %v1253 = vmax.f32 %v1189, 0.0
        %v1254 = vmax.f32 %v1190, 0.0
        %v1255 = vmax.f32 %v1191, 0.0
        %v1256 = vmax.f32 %v1192, 0.0
        %v1257 = vmax.f32 %v1193, 0.0
        %v1258 = vmax.f32 %v1194, 0.0
        %v1259 = vmax.f32 %v1195, 0.0
        %v1260 = vmax.f32 %v1196, 0.0
        %v1261 = vmax.f32 %v1197, 0.0
        %v1262 = vmax.f32 %v1198, 0.0
        %v1263 = vmax.f32 %v1199, 0.0
        %v1264 = vmax.f32 %v1200, 0.0
        %v1265 = vmax.f32 %v1201, 0.0
        %v1266 = vmax.f32 %v1202, 0.0
        %v1267 = vmax.f32 %v1203, 0.0
        %v1268 = vmax.f32 %v1204, 0.0
        %v1269 = vmax.f32 %v1205, 0.0
        %v1270 = vmax.f32 %v1206, 0.0
        %v1271 = vmax.f32 %v1207, 0.0
        %v1272 = vmax.f32 %v1208, 0.0
        %v1273 = vmax.f32 %v1209, 0.0
        %v1274 = vmax.f32 %v1210, 0.0
        %v1275 = vmax.f32 %v1211, 0.0
        %v1276 = vmax.f32 %v1212, 0.0
        %v1277 = vmax.f32 %v1213, 0.0
        %v1278 = vmax.f32 %v1214, 0.0
        %v1279 = vmax.f32 %v1215, 0.0
        %v1280 = vmax.f32 %v1216, 0.0
        %v1281 = vmax.f32 %v1217, 0.0
        %v1282 = vmax.f32 %v1218, 0.0
        %v1283 = vmax.f32 %v1219, 0.0
        %v1284 = vmax.f32 %v1220, 0.0
        %v1285 = vmax.f32 %v1221, 0.0
        %v1286 = vmax.f32 %v1222, 0.0
        %v1287 = vmax.f32 %v1223, 0.0
        %v1288 = vmax.f32 %v1224, 0.0
        %v1289 = vmax.f32 %v1225, 0.0
        %v1290 = vmax.f32 %v1226, 0.0
        %v1291 = vmax.f32 %v1227, 0.0
        %v1292 = vmax.f32 %v1228, 0.0
        %v1293 = vmax.f32 %v1229, 0.0
        %v1294 = vmax.f32 %v1230, 0.0
        %v1295 = vmax.f32 %v1231, 0.0
        %v1296 = vmax.f32 %v1232, 0.0
        %v1297 = vmax.f32 %v1233, 0.0
        %v1298 = vmax.f32 %v1234, 0.0
        %v1299 = vmax.f32 %v1235, 0.0
        %v1300 = vmax.f32 %v1236, 0.0
        %v1301 = vmax.f32 %v1237, 0.0
        %v1302 = vmax.f32 %v1238, 0.0
        %v1303 = vmax.f32 %v1239, 0.0
        %v1304 = vmax.f32 %v1240, 0.0
        %vm1305 = vcmask 523264
        %1306 = vst.msk [vmem:[%s295] sm:$0xff] %vm1305, %v1241
        %1307 = vst.msk [vmem:[%s295 + $0x8] sm:$0xff] %vm1305, %v1242
        %1308 = vst.msk [vmem:[%s295 + $0x10] sm:$0xff] %vm1305, %v1243
        %1309 = vst.msk [vmem:[%s295 + $0x18] sm:$0xff] %vm1305, %v1244
        %1310 = vst.msk [vmem:[%s295 + $0x20] sm:$0xff] %vm1305, %v1245
        %1311 = vst.msk [vmem:[%s295 + $0x28] sm:$0xff] %vm1305, %v1246
        %1312 = vst.msk [vmem:[%s295 + $0x30] sm:$0xff] %vm1305, %v1247
        %1313 = vst.msk [vmem:[%s295 + $0x38] sm:$0xff] %vm1305, %v1248
        %1314 = vst.msk [vmem:[%s295 + $0x40] sm:$0xff] %vm1305, %v1249
        %1315 = vst.msk [vmem:[%s295 + $0x48] sm:$0xff] %vm1305, %v1250
        %1316 = vst.msk [vmem:[%s295 + $0x50] sm:$0xff] %vm1305, %v1251
        %1317 = vst.msk [vmem:[%s295 + $0x58] sm:$0xff] %vm1305, %v1252
        %1318 = vst.msk [vmem:[%s295 + $0x60] sm:$0xff] %vm1305, %v1253
        %1319 = vst.msk [vmem:[%s295 + $0x68] sm:$0xff] %vm1305, %v1254
        %1320 = vst.msk [vmem:[%s295 + $0x70] sm:$0xff] %vm1305, %v1255
        %1321 = vst.msk [vmem:[%s295 + $0x78] sm:$0xff] %vm1305, %v1256
        %1322 = vst.msk [vmem:[%s295 + $0x80] sm:$0xff] %vm1305, %v1257
        %1323 = vst.msk [vmem:[%s295 + $0x88] sm:$0xff] %vm1305, %v1258
        %1324 = vst.msk [vmem:[%s295 + $0x90] sm:$0xff] %vm1305, %v1259
        %1325 = vst.msk [vmem:[%s295 + $0x98] sm:$0xff] %vm1305, %v1260
        %1326 = vst.msk [vmem:[%s295 + $0xa0] sm:$0xff] %vm1305, %v1261
        %1327 = vst.msk [vmem:[%s295 + $0xa8] sm:$0xff] %vm1305, %v1262
        %1328 = vst.msk [vmem:[%s295 + $0xb0] sm:$0xff] %vm1305, %v1263
        %1329 = vst.msk [vmem:[%s295 + $0xb8] sm:$0xff] %vm1305, %v1264
        %1330 = vst.msk [vmem:[%s295 + $0xc0] sm:$0xff] %vm1305, %v1265
        %1331 = vst.msk [vmem:[%s295 + $0xc8] sm:$0xff] %vm1305, %v1266
        %1332 = vst.msk [vmem:[%s295 + $0xd0] sm:$0xff] %vm1305, %v1267
        %1333 = vst.msk [vmem:[%s295 + $0xd8] sm:$0xff] %vm1305, %v1268
        %1334 = vst.msk [vmem:[%s295 + $0xe0] sm:$0xff] %vm1305, %v1269
        %1335 = vst.msk [vmem:[%s295 + $0xe8] sm:$0xff] %vm1305, %v1270
        %1336 = vst.msk [vmem:[%s295 + $0xf0] sm:$0xff] %vm1305, %v1271
        %1337 = vst.msk [vmem:[%s295 + $0xf8] sm:$0xff] %vm1305, %v1272
        %1338 = vst.msk [vmem:[%s295 + $0x100] sm:$0xff] %vm1305, %v1273
        %1339 = vst.msk [vmem:[%s295 + $0x108] sm:$0xff] %vm1305, %v1274
        %1340 = vst.msk [vmem:[%s295 + $0x110] sm:$0xff] %vm1305, %v1275
        %1341 = vst.msk [vmem:[%s295 + $0x118] sm:$0xff] %vm1305, %v1276
        %1342 = vst.msk [vmem:[%s295 + $0x120] sm:$0xff] %vm1305, %v1277
        %1343 = vst.msk [vmem:[%s295 + $0x128] sm:$0xff] %vm1305, %v1278
        %1344 = vst.msk [vmem:[%s295 + $0x130] sm:$0xff] %vm1305, %v1279
        %1345 = vst.msk [vmem:[%s295 + $0x138] sm:$0xff] %vm1305, %v1280
        %1346 = vst.msk [vmem:[%s295 + $0x140] sm:$0xff] %vm1305, %v1281
        %1347 = vst.msk [vmem:[%s295 + $0x148] sm:$0xff] %vm1305, %v1282
        %1348 = vst.msk [vmem:[%s295 + $0x150] sm:$0xff] %vm1305, %v1283
        %1349 = vst.msk [vmem:[%s295 + $0x158] sm:$0xff] %vm1305, %v1284
        %1350 = vst.msk [vmem:[%s295 + $0x160] sm:$0xff] %vm1305, %v1285
        %1351 = vst.msk [vmem:[%s295 + $0x168] sm:$0xff] %vm1305, %v1286
        %1352 = vst.msk [vmem:[%s295 + $0x170] sm:$0xff] %vm1305, %v1287
        %1353 = vst.msk [vmem:[%s295 + $0x178] sm:$0xff] %vm1305, %v1288
        %1354 = vst.msk [vmem:[%s295 + $0x180] sm:$0xff] %vm1305, %v1289
        %1355 = vst.msk [vmem:[%s295 + $0x188] sm:$0xff] %vm1305, %v1290
        %1356 = vst.msk [vmem:[%s295 + $0x190] sm:$0xff] %vm1305, %v1291
        %1357 = vst.msk [vmem:[%s295 + $0x198] sm:$0xff] %vm1305, %v1292
        %1358 = vst.msk [vmem:[%s295 + $0x1a0] sm:$0xff] %vm1305, %v1293
        %1359 = vst.msk [vmem:[%s295 + $0x1a8] sm:$0xff] %vm1305, %v1294
        %1360 = vst.msk [vmem:[%s295 + $0x1b0] sm:$0xff] %vm1305, %v1295
        %1361 = vst.msk [vmem:[%s295 + $0x1b8] sm:$0xff] %vm1305, %v1296
        %1362 = vst.msk [vmem:[%s295 + $0x1c0] sm:$0xff] %vm1305, %v1297
        %1363 = vst.msk [vmem:[%s295 + $0x1c8] sm:$0xff] %vm1305, %v1298
        %1364 = vst.msk [vmem:[%s295 + $0x1d0] sm:$0xff] %vm1305, %v1299
        %1365 = vst.msk [vmem:[%s295 + $0x1d8] sm:$0xff] %vm1305, %v1300
        %1366 = vst.msk [vmem:[%s295 + $0x1e0] sm:$0xff] %vm1305, %v1301
        %1367 = vst.msk [vmem:[%s295 + $0x1e8] sm:$0xff] %vm1305, %v1302
        %1368 = vst.msk [vmem:[%s295 + $0x1f0] sm:$0xff] %vm1305, %v1303
        %1369 = vst.msk [vmem:[%s295 + $0x1f8] sm:$0xff] %vm1305, %v1304
        %s1370 = smul.u32 64, %s23
        %p1371 = scmp.lt.s32.totalorder %s1370, 3135
        %s1372 = scalar_select %p1371, %s1370, 3135
        %p1373 = scmp.lt.s32.totalorder %s24, 0
        %s1374 = scalar_select %p1373, %s24, 0
        %s1375 = sadd.s32 %s1374, %s1372
        %s1376 = smul.addr %s1375, 8
        %s1377 = scalar_lea.vmem %s4, %s1376
        // Predicated region
        $region49: #{tpu_custom_call.1} parent=35 // pred_check
          %p1378 = pneg %p155
        $region50: #{tpu_custom_call.1} parent=35 // pred_check_branch
          %1380 = sbr.rel (%p1378) target = $region52
        $region51: #{tpu_custom_call.1} parent=35 // pred_region
          %s1381 = smul.u32 64, %s23
        $region52: #{tpu_custom_call.1} parent=35 // pred_fallthru
          _
      $region36: #{tpu_custom_call.1} parent=5 // pred_fallthru
        _
      %p1382 = scmp.le.s32.totalorder 2, %s14
      // Predicated region
      $region53: #{tpu_custom_call.1} parent=5 // pred_check
        %p1383 = pneg %p1382
      $region54: #{tpu_custom_call.1} parent=5 // pred_check_branch
        %1385 = sbr.rel (%p1383) target = $region56
      $region55: #{tpu_custom_call.1} parent=5 // pred_region
        %s1386 = ssub.s32 %s14, 2
        // Predicated region
        $region57: #{tpu_custom_call.1} parent=55 // pred_check
          %p1387 = pneg %p161
        $region58: #{tpu_custom_call.1} parent=55 // pred_check_branch
          %1389 = sbr.rel (%p1387) target = $region60
        $region59: #{tpu_custom_call.1} parent=55 // pred_region
          %s1390 = smul.u32 64, %s25
          %p1391 = scmp.lt.s32.totalorder %s1390, 3135
          %s1392 = scalar_select %p1391, %s1390, 3135
          %p1393 = scmp.lt.s32.totalorder %s26, 0
          %s1394 = scalar_select %p1393, %s26, 0
          %s1395 = sadd.s32 %s1394, %s1392
          %s1396 = smul.addr %s1395, 8
          %s1397 = scalar_lea.vmem %s4, %s1396
        $region60: #{tpu_custom_call.1} parent=55 // pred_fallthru
          _
      $region56: #{tpu_custom_call.1} parent=5 // pred_fallthru
        _
    $region6: #{tpu_custom_call.1} parent=1 // loop_footer
      %s18 = sadd.s32 1, %s14
    $region7: #{tpu_custom_call.1} parent=1 // loop_footer_branch
      %13 = sbr.rel target = $region3
    $region8: #{tpu_custom_call.1} parent=1 // loop_exit
      _
    %1398 = vsyncpa [#allocation3], 1
    %s1399 = scalar_lea.sflag [#allocation3], 1
    %1400 = vsyncpa %s1399, 1
    %1401 = vsyncpa [#allocation5], 1

</llo_original>
